<compile_context>
chip_gen: v7x
topology: tpu7x:2x2x1
jax: 0.10.0
libtpu: 0.0.40
codegen_flags: <defaults>
</compile_context>

<pallas_src>
import math

import jax
import jax.numpy as jnp
from jax.experimental import pallas as pl
from jax.experimental.pallas import tpu as pltpu


def make_mhba_kernel(ln_eps=1e-5):
    def kernel(q_ref, k_ref, v_ref, box_ref,
               wq_ref, bq_ref, wk_ref, bk_ref, wv_ref, bv_ref,
               wo_ref, bo_ref, gamma_ref, beta_ref,
               out_ref, acc_ref):
        hh = pl.program_id(2)

        @pl.when(hh == 0)
        def _():
            acc_ref[...] = jnp.zeros_like(acc_ref)

        xq = q_ref[...]                                        # (TQ, DM) f32

        # Per-head projections: bf16 MXU operands, f32 accumulation.
        qh = jnp.dot(xq.astype(jnp.bfloat16), wq_ref[...],
                     preferred_element_type=jnp.float32) + bq_ref[...]   # (TQ, d_k)
        kh = jnp.dot(k_ref[...].astype(jnp.bfloat16), wk_ref[...],
                     preferred_element_type=jnp.float32) + bk_ref[...]   # (NK, d_k)
        vh = jnp.dot(v_ref[...].astype(jnp.bfloat16), wv_ref[...],
                     preferred_element_type=jnp.float32) + bv_ref[...]   # (NK, d_v)

        # q . k^T as a direct contraction (no explicit transpose / relayout).
        # 1/sqrt(d_k) is already folded into Wq/bq in the wrapper.
        att = jax.lax.dot_general(
            qh.astype(jnp.bfloat16), kh.astype(jnp.bfloat16),
            dimension_numbers=(((1,), (1,)), ((), ())),
            preferred_element_type=jnp.float32)                # (TQ, NK)

        # log(clamp(box, 1e-6)) + att, numerically-stable softmax in f32.
        logits = jnp.log(jnp.maximum(box_ref[...], 1e-6)) + att
        m = jnp.max(logits, axis=-1, keepdims=True)
        p = jnp.exp(logits - m)
        denom = jnp.sum(p, axis=-1, keepdims=True)
        p = p * pl.reciprocal(denom, approx=True)

        head = jnp.dot(p.astype(jnp.bfloat16), vh.astype(jnp.bfloat16),
                       preferred_element_type=jnp.float32)     # (TQ, d_v)

        # Fold this head's slice of the output projection into the accumulator
        # instead of concatenating head outputs along the lane axis.
        acc_ref[...] += jnp.dot(head.astype(jnp.bfloat16), wo_ref[...],
                                preferred_element_type=jnp.float32)

        @pl.when(hh == pl.num_programs(2) - 1)
        def _():
            # output bias + residual + LayerNorm (all f32)
            y = xq + acc_ref[...] + bo_ref[...]
            mean = jnp.mean(y, axis=-1, keepdims=True)
            yc = y - mean
            var = jnp.mean(yc * yc, axis=-1, keepdims=True)
            yn = yc * jax.lax.rsqrt(var + ln_eps)
            out_ref[...] = (yn * gamma_ref[...] + beta_ref[...]).astype(out_ref.dtype)

    return kernel


def _pick_q_tile(nq, pref=128):
    # Largest convenient query tile: 128 if it divides NQ, else the full NQ
    # (small-shape fallback; full-dim blocks always satisfy the (8,128) rule).
    return pref if nq % pref == 0 else nq


def mhba_forward(queries, keys, values, box, params, *, h, d_k, d_v):
    B, NQ, DM = queries.shape
    NK = keys.shape[1]
    TQ = _pick_q_tile(NQ)
    scale = 1.0 / math.sqrt(d_k)

    # Host-side, one-time re-layout into per-head stacks.  The attention scale
    # is folded into the query projection; MXU operands are stored as bf16,
    # biases / LN params stay f32.
    wq_h = ((params["wq"] * scale).reshape(DM, h, d_k)
            .transpose(1, 0, 2).astype(jnp.bfloat16))             # (h, DM, d_k)
    wk_h = (params["wk"].reshape(DM, h, d_k)
            .transpose(1, 0, 2).astype(jnp.bfloat16))             # (h, DM, d_k)
    wv_h = (params["wv"].reshape(DM, h, d_v)
            .transpose(1, 0, 2).astype(jnp.bfloat16))             # (h, DM, d_v)
    wo_h = params["wo"].reshape(h, d_v, DM).astype(jnp.bfloat16)  # (h, d_v, DM)
    bq_h = (params["bq"] * scale).reshape(h, 1, d_k).astype(jnp.float32)
    bk_h = params["bk"].reshape(h, 1, d_k).astype(jnp.float32)
    bv_h = params["bv"].reshape(h, 1, d_v).astype(jnp.float32)
    bo = params["bo"].reshape(1, DM).astype(jnp.float32)
    gamma = params["gamma"].reshape(1, DM).astype(jnp.float32)
    beta = params["beta"].reshape(1, DM).astype(jnp.float32)

    grid = (B, NQ // TQ, h)

    def q_map(b, qi, hh):
        return (b, qi, 0)

    def kv_map(b, qi, hh):
        return (b, 0, 0)

    def box_map(b, qi, hh):
        return (b, hh, qi, 0)

    def head_map(b, qi, hh):
        return (hh, 0, 0)

    def const_map(b, qi, hh):
        return (0, 0)

    in_specs = [
        pl.BlockSpec((None, TQ, DM), q_map),          # queries   -> (TQ, DM)
        pl.BlockSpec((None, NK, DM), kv_map),         # keys      -> (NK, DM)
        pl.BlockSpec((None, NK, DM), kv_map),         # values    -> (NK, DM)
        pl.BlockSpec((None, None, TQ, NK), box_map),  # box       -> (TQ, NK)
        pl.BlockSpec((None, DM, d_k), head_map),      # Wq (scaled, per head)
        pl.BlockSpec((None, 1, d_k), head_map),       # bq (scaled)
        pl.BlockSpec((None, DM, d_k), head_map),      # Wk
        pl.BlockSpec((None, 1, d_k), head_map),       # bk
        pl.BlockSpec((None, DM, d_v), head_map),      # Wv
        pl.BlockSpec((None, 1, d_v), head_map),       # bv
        pl.BlockSpec((None, d_v, DM), head_map),      # Wo (per head)
        pl.BlockSpec((1, DM), const_map),             # bo
        pl.BlockSpec((1, DM), const_map),             # ln gamma
        pl.BlockSpec((1, DM), const_map),             # ln beta
    ]
    out_spec = pl.BlockSpec((None, TQ, DM), q_map)

    flops = 2 * B * (NQ * DM * h * d_k            # Q projection
                     + NK * DM * h * d_k          # K projection
                     + NK * DM * h * d_v          # V projection
                     + h * NQ * NK * (d_k + d_v)  # QK^T and PV
                     + NQ * h * d_v * DM)         # output projection
    transcendentals = 2 * B * h * NQ * NK         # log + exp
    bytes_accessed = (
        4 * (queries.size + keys.size + values.size + box.size + B * NQ * DM)
        + 2 * (wq_h.size + wk_h.size + wv_h.size + wo_h.size)
        + 4 * (bq_h.size + bk_h.size + bv_h.size + bo.size + gamma.size + beta.size))

    fn = pl.pallas_call(
        make_mhba_kernel(),
        out_shape=jax.ShapeDtypeStruct((B, NQ, DM), queries.dtype),
        grid_spec=pltpu.PrefetchScalarGridSpec(
            num_scalar_prefetch=0,
            grid=grid,
            in_specs=in_specs,
            out_specs=out_spec,
            scratch_shapes=[pltpu.VMEM((TQ, DM), jnp.float32)],
        ),
        compiler_params=pltpu.CompilerParams(
            dimension_semantics=("parallel", "parallel", "arbitrary"),
            vmem_limit_bytes=64 * 1024 * 1024,
        ),
        cost_estimate=pl.CostEstimate(
            flops=flops,
            transcendentals=transcendentals,
            bytes_accessed=bytes_accessed,
        ),
    )
    return fn(queries, keys, values, box,
              wq_h, bq_h, wk_h, bk_h, wv_h, bv_h,
              wo_h, bo, gamma, beta)


def xavier_uniform(key, fan_in, fan_out):
    bound = math.sqrt(6.0 / (fan_in + fan_out))
    # stored as (in, out) so the kernel / reference can do x @ W
    return jax.random.uniform(key, (fan_in, fan_out), jnp.float32, -bound, bound)


def init_params(key, d_model, d_k, d_v, h):
    ks = jax.random.split(key, 4)
    return {
        "wq": xavier_uniform(ks[0], d_model, h * d_k),
        "bq": jnp.zeros((h * d_k,), jnp.float32),
        "wk": xavier_uniform(ks[1], d_model, h * d_k),
        "bk": jnp.zeros((h * d_k,), jnp.float32),
        "wv": xavier_uniform(ks[2], d_model, h * d_v),
        "bv": jnp.zeros((h * d_v,), jnp.float32),
        "wo": xavier_uniform(ks[3], h * d_v, d_model),
        "bo": jnp.zeros((d_model,), jnp.float32),
        "gamma": jnp.ones((d_model,), jnp.float32),
        "beta": jnp.zeros((d_model,), jnp.float32),
    }


def mhba_reference(queries, keys, values, box, params, *, h, d_k, d_v):
    """Pure-JAX f32 reference mirroring the PyTorch forward (eval mode)."""
    B, NQ, DM = queries.shape
    NK = keys.shape[1]
    q = queries @ params["wq"] + params["bq"]
    k = keys @ params["wk"] + params["bk"]
    v = values @ params["wv"] + params["bv"]
    q = q.reshape(B, NQ, h, d_k).transpose(0, 2, 1, 3)
    k = k.reshape(B, NK, h, d_k).transpose(0, 2, 3, 1)
    v = v.reshape(B, NK, h, d_v).transpose(0, 2, 1, 3)
    att = jnp.matmul(q, k) / math.sqrt(d_k)
    w_mn = jnp.log(jnp.maximum(box, 1e-6)) + att
    w_mn = jax.nn.softmax(w_mn, axis=-1)
    out = jnp.matmul(w_mn, v).transpose(0, 2, 1, 3).reshape(B, NQ, h * d_v)
    out = out @ params["wo"] + params["bo"]
    y = queries + out
    mean = jnp.mean(y, axis=-1, keepdims=True)
    var = jnp.mean((y - mean) ** 2, axis=-1, keepdims=True)
    yn = (y - mean) / jnp.sqrt(var + 1e-5)
    return yn * params["gamma"] + params["beta"]


if __name__ == "__main__":
    # Small shapes: batch=2, nq=nk=8, d_model=32, heads=4, d_k=d_v=8
    B, NQ, NK, D_MODEL, H, D_K, D_V = 2, 8, 8, 32, 4, 8, 8

    key = jax.random.PRNGKey(0)
    kq, kk, kv, kb, kp = jax.random.split(key, 5)

    queries = jax.random.normal(kq, (B, NQ, D_MODEL), jnp.float32)
    keys = jax.random.normal(kk, (B, NK, D_MODEL), jnp.float32)
    values = jax.random.normal(kv, (B, NK, D_MODEL), jnp.float32)
    # box relation embed matrix is non-negative (relative-geometry weights)
    box = jax.random.uniform(kb, (B, H, NQ, NK), jnp.float32, 0.0, 1.0)

    params = init_params(kp, D_MODEL, D_K, D_V, H)

    out = mhba_forward(queries, keys, values, box, params, h=H, d_k=D_K, d_v=D_V)
    out = jax.block_until_ready(out)

    ref = mhba_reference(queries, keys, values, box, params, h=H, d_k=D_K, d_v=D_V)
    assert out.shape == (B, NQ, D_MODEL)
    max_err = float(jnp.max(jnp.abs(out - ref)))
    # bf16 MXU operands (per perf review) with f32 accumulation / softmax / LN:
    # tolerance is slightly looser than a pure-f32 kernel.
    assert max_err < 2e-2, f"mismatch vs reference: max abs err {max_err}"

    print("KERNEL_OK")
</pallas_src>

<mosaic_0001>
module attributes {stable_mosaic.version = 11 : i64} {
  func.func @kernel(%arg0: i32, %arg1: i32, %arg2: i32, %arg3: memref<1x8x32xf32, #tpu.memory_space<vmem>>, %arg4: memref<1x8x32xf32, #tpu.memory_space<vmem>>, %arg5: memref<1x8x32xf32, #tpu.memory_space<vmem>>, %arg6: memref<1x1x8x8xf32, #tpu.memory_space<vmem>>, %arg7: memref<1x32x8xbf16, #tpu.memory_space<vmem>>, %arg8: memref<1x1x8xf32, #tpu.memory_space<vmem>>, %arg9: memref<1x32x8xbf16, #tpu.memory_space<vmem>>, %arg10: memref<1x1x8xf32, #tpu.memory_space<vmem>>, %arg11: memref<1x32x8xbf16, #tpu.memory_space<vmem>>, %arg12: memref<1x1x8xf32, #tpu.memory_space<vmem>>, %arg13: memref<1x8x32xbf16, #tpu.memory_space<vmem>>, %arg14: memref<1x32xf32, #tpu.memory_space<vmem>>, %arg15: memref<1x32xf32, #tpu.memory_space<vmem>>, %arg16: memref<1x32xf32, #tpu.memory_space<vmem>>, %arg17: memref<1x8x32xf32, #tpu.memory_space<vmem>>, %arg18: memref<8x32xf32, #tpu.memory_space<vmem>>) attributes {dimension_semantics = [#tpu.dimension_semantics<parallel>, #tpu.dimension_semantics<parallel>, #tpu.dimension_semantics<arbitrary>], iteration_bounds = array<i64: 2, 1, 4>, scalar_prefetch = 0 : i64, scratch_operands = 1 : i64, tpu.core_type = #tpu.core_type<tc>, window_params = [{transform_indices = @transform_0, window_bounds = array<i64: 1, 8, 32>}, {transform_indices = @transform_1, window_bounds = array<i64: 1, 8, 32>}, {transform_indices = @transform_2, window_bounds = array<i64: 1, 8, 32>}, {transform_indices = @transform_3, window_bounds = array<i64: 1, 1, 8, 8>}, {transform_indices = @transform_4, window_bounds = array<i64: 1, 32, 8>}, {transform_indices = @transform_5, window_bounds = array<i64: 1, 1, 8>}, {transform_indices = @transform_6, window_bounds = array<i64: 1, 32, 8>}, {transform_indices = @transform_7, window_bounds = array<i64: 1, 1, 8>}, {transform_indices = @transform_8, window_bounds = array<i64: 1, 32, 8>}, {transform_indices = @transform_9, window_bounds = array<i64: 1, 1, 8>}, {transform_indices = @transform_10, window_bounds = array<i64: 1, 8, 32>}, {pipeline_mode = #tpu.pipeline_mode<synchronous>, transform_indices = @transform_11, window_bounds = array<i64: 1, 32>}, {pipeline_mode = #tpu.pipeline_mode<synchronous>, transform_indices = @transform_12, window_bounds = array<i64: 1, 32>}, {pipeline_mode = #tpu.pipeline_mode<synchronous>, transform_indices = @transform_13, window_bounds = array<i64: 1, 32>}, {transform_indices = @transform_14, window_bounds = array<i64: 1, 8, 32>}]} {
    %c0_i32 = arith.constant 0 : i32
    %0 = arith.cmpi eq, %arg2, %c0_i32 : i32
    %1 = arith.extui %0 : i1 to i32
    %c0_i32_0 = arith.constant 0 : i32
    %2 = arith.cmpi ne, %1, %c0_i32_0 : i32
    scf.if %2 {
      %cst_47 = arith.constant 0.000000e+00 : f32
      %65 = vector.broadcast %cst_47 : f32 to vector<8x32xf32>
      %c0_48 = arith.constant 0 : index
      %c0_49 = arith.constant 0 : index
      %66 = vector.load %arg18[%c0_48, %c0_49] : memref<8x32xf32, #tpu.memory_space<vmem>>, vector<8x32xf32>
      tpu.vector_store %arg18[%c0_48, %c0_49], %65 {strides = array<i32>} : memref<8x32xf32, #tpu.memory_space<vmem>>, vector<8x32xf32>,
    } else {
    }
    %c0 = arith.constant 0 : index
    %c0_1 = arith.constant 0 : index
    %c0_2 = arith.constant 0 : index
    %3 = vector.load %arg3[%c0, %c0_1, %c0_2] : memref<1x8x32xf32, #tpu.memory_space<vmem>>, vector<1x8x32xf32>
    %4 = vector.shape_cast %3 : vector<1x8x32xf32> to vector<8x32xf32>
    %5 = arith.truncf %4 : vector<8x32xf32> to vector<8x32xbf16>
    %c0_3 = arith.constant 0 : index
    %c0_4 = arith.constant 0 : index
    %c0_5 = arith.constant 0 : index
    %6 = vector.load %arg7[%c0_3, %c0_4, %c0_5] : memref<1x32x8xbf16, #tpu.memory_space<vmem>>, vector<1x32x8xbf16>
    %7 = vector.shape_cast %6 : vector<1x32x8xbf16> to vector<32x8xbf16>
    %cst = arith.constant dense<0.000000e+00> : vector<8x8xf32>
    %8 = tpu.matmul %5, %7, %cst {dimension_numbers = #tpu.dot_dimension_numbers<[1], [0], [0], [1], [0, 0, 1, 1], [], []>} : vector<8x32xbf16>, vector<32x8xbf16>, vector<8x8xf32> -> vector<8x8xf32>
    %c0_6 = arith.constant 0 : index
    %c0_7 = arith.constant 0 : index
    %c0_8 = arith.constant 0 : index
    %9 = vector.load %arg8[%c0_6, %c0_7, %c0_8] : memref<1x1x8xf32, #tpu.memory_space<vmem>>, vector<1x1x8xf32>
    %10 = vector.shape_cast %9 : vector<1x1x8xf32> to vector<1x8xf32>
    %11 = vector.broadcast %10 : vector<1x8xf32> to vector<8x8xf32>
    %12 = arith.addf %8, %11 : vector<8x8xf32>
    %c0_9 = arith.constant 0 : index
    %c0_10 = arith.constant 0 : index
    %c0_11 = arith.constant 0 : index
    %13 = vector.load %arg4[%c0_9, %c0_10, %c0_11] : memref<1x8x32xf32, #tpu.memory_space<vmem>>, vector<1x8x32xf32>
    %14 = vector.shape_cast %13 : vector<1x8x32xf32> to vector<8x32xf32>
    %15 = arith.truncf %14 : vector<8x32xf32> to vector<8x32xbf16>
    %c0_12 = arith.constant 0 : index
    %c0_13 = arith.constant 0 : index
    %c0_14 = arith.constant 0 : index
    %16 = vector.load %arg9[%c0_12, %c0_13, %c0_14] : memref<1x32x8xbf16, #tpu.memory_space<vmem>>, vector<1x32x8xbf16>
    %17 = vector.shape_cast %16 : vector<1x32x8xbf16> to vector<32x8xbf16>
    %cst_15 = arith.constant dense<0.000000e+00> : vector<8x8xf32>
    %18 = tpu.matmul %15, %17, %cst_15 {dimension_numbers = #tpu.dot_dimension_numbers<[1], [0], [0], [1], [0, 0, 1, 1], [], []>} : vector<8x32xbf16>, vector<32x8xbf16>, vector<8x8xf32> -> vector<8x8xf32>
    %c0_16 = arith.constant 0 : index
    %c0_17 = arith.constant 0 : index
    %c0_18 = arith.constant 0 : index
    %19 = vector.load %arg10[%c0_16, %c0_17, %c0_18] : memref<1x1x8xf32, #tpu.memory_space<vmem>>, vector<1x1x8xf32>
    %20 = vector.shape_cast %19 : vector<1x1x8xf32> to vector<1x8xf32>
    %21 = vector.broadcast %20 : vector<1x8xf32> to vector<8x8xf32>
    %22 = arith.addf %18, %21 : vector<8x8xf32>
    %c0_19 = arith.constant 0 : index
    %c0_20 = arith.constant 0 : index
    %c0_21 = arith.constant 0 : index
    %23 = vector.load %arg5[%c0_19, %c0_20, %c0_21] : memref<1x8x32xf32, #tpu.memory_space<vmem>>, vector<1x8x32xf32>
    %24 = vector.shape_cast %23 : vector<1x8x32xf32> to vector<8x32xf32>
    %25 = arith.truncf %24 : vector<8x32xf32> to vector<8x32xbf16>
    %c0_22 = arith.constant 0 : index
    %c0_23 = arith.constant 0 : index
    %c0_24 = arith.constant 0 : index
    %26 = vector.load %arg11[%c0_22, %c0_23, %c0_24] : memref<1x32x8xbf16, #tpu.memory_space<vmem>>, vector<1x32x8xbf16>
    %27 = vector.shape_cast %26 : vector<1x32x8xbf16> to vector<32x8xbf16>
    %cst_25 = arith.constant dense<0.000000e+00> : vector<8x8xf32>
    %28 = tpu.matmul %25, %27, %cst_25 {dimension_numbers = #tpu.dot_dimension_numbers<[1], [0], [0], [1], [0, 0, 1, 1], [], []>} : vector<8x32xbf16>, vector<32x8xbf16>, vector<8x8xf32> -> vector<8x8xf32>
    %c0_26 = arith.constant 0 : index
    %c0_27 = arith.constant 0 : index
    %c0_28 = arith.constant 0 : index
    %29 = vector.load %arg12[%c0_26, %c0_27, %c0_28] : memref<1x1x8xf32, #tpu.memory_space<vmem>>, vector<1x1x8xf32>
    %30 = vector.shape_cast %29 : vector<1x1x8xf32> to vector<1x8xf32>
    %31 = vector.broadcast %30 : vector<1x8xf32> to vector<8x8xf32>
    %32 = arith.addf %28, %31 : vector<8x8xf32>
    %33 = arith.truncf %12 : vector<8x8xf32> to vector<8x8xbf16>
    %34 = arith.truncf %22 : vector<8x8xf32> to vector<8x8xbf16>
    %cst_29 = arith.constant dense<0.000000e+00> : vector<8x8xf32>
    %35 = tpu.matmul %33, %34, %cst_29 {dimension_numbers = #tpu.dot_dimension_numbers<[1], [1], [0], [0], [0, 0, 1, 0], [], []>} : vector<8x8xbf16>, vector<8x8xbf16>, vector<8x8xf32> -> vector<8x8xf32>
    %c0_30 = arith.constant 0 : index
    %c0_31 = arith.constant 0 : index
    %c0_32 = arith.constant 0 : index
    %c0_33 = arith.constant 0 : index
    %36 = vector.load %arg6[%c0_30, %c0_31, %c0_32, %c0_33] : memref<1x1x8x8xf32, #tpu.memory_space<vmem>>, vector<1x1x8x8xf32>
    %37 = vector.shape_cast %36 : vector<1x1x8x8xf32> to vector<8x8xf32>
    %cst_34 = arith.constant 9.99999997E-7 : f32
    %38 = vector.broadcast %cst_34 : f32 to vector<8x8xf32>
    %39 = arith.maximumf %37, %38 : vector<8x8xf32>
    %40 = math.log %39 : vector<8x8xf32>
    %41 = arith.addf %40, %35 : vector<8x8xf32>
    %cst_35 = arith.constant dense<0xFF800000> : vector<8xf32>
    %42 = vector.multi_reduction <maximumf>, %41, %cst_35 [1] : vector<8x8xf32> to vector<8xf32>
    %43 = vector.shape_cast %42 : vector<8xf32> to vector<8x1xf32>
    %44 = vector.broadcast %43 : vector<8x1xf32> to vector<8x8xf32>
    %45 = arith.subf %41, %44 : vector<8x8xf32>
    %46 = math.exp %45 : vector<8x8xf32>
    %cst_36 = arith.constant dense<0.000000e+00> : vector<8xf32>
    %47 = vector.multi_reduction <add>, %46, %cst_36 [1] : vector<8x8xf32> to vector<8xf32>
    %48 = vector.shape_cast %47 : vector<8xf32> to vector<8x1xf32>
    %49 = tpu.reciprocal %48 {approx = true} : vector<8x1xf32> -> vector<8x1xf32>
    %50 = vector.broadcast %49 : vector<8x1xf32> to vector<8x8xf32>
    %51 = arith.mulf %46, %50 : vector<8x8xf32>
    %52 = arith.truncf %51 : vector<8x8xf32> to vector<8x8xbf16>
    %53 = arith.truncf %32 : vector<8x8xf32> to vector<8x8xbf16>
    %cst_37 = arith.constant dense<0.000000e+00> : vector<8x8xf32>
    %54 = tpu.matmul %52, %53, %cst_37 {dimension_numbers = #tpu.dot_dimension_numbers<[1], [0], [0], [1], [0, 0, 1, 1], [], []>} : vector<8x8xbf16>, vector<8x8xbf16>, vector<8x8xf32> -> vector<8x8xf32>
    %c0_38 = arith.constant 0 : index
    %c0_39 = arith.constant 0 : index
    %55 = vector.load %arg18[%c0_38, %c0_39] : memref<8x32xf32, #tpu.memory_space<vmem>>, vector<8x32xf32>
    %56 = arith.truncf %54 : vector<8x8xf32> to vector<8x8xbf16>
    %c0_40 = arith.constant 0 : index
    %c0_41 = arith.constant 0 : index
    %c0_42 = arith.constant 0 : index
    %57 = vector.load %arg13[%c0_40, %c0_41, %c0_42] : memref<1x8x32xbf16, #tpu.memory_space<vmem>>, vector<1x8x32xbf16>
    %58 = vector.shape_cast %57 : vector<1x8x32xbf16> to vector<8x32xbf16>
    %cst_43 = arith.constant dense<0.000000e+00> : vector<8x32xf32>
    %59 = tpu.matmul %56, %58, %cst_43 {dimension_numbers = #tpu.dot_dimension_numbers<[1], [0], [0], [1], [0, 0, 1, 1], [], []>} : vector<8x8xbf16>, vector<8x32xbf16>, vector<8x32xf32> -> vector<8x32xf32>
    %60 = arith.addf %55, %59 : vector<8x32xf32>
    %c0_44 = arith.constant 0 : index
    %c0_45 = arith.constant 0 : index
    %61 = vector.load %arg18[%c0_44, %c0_45] : memref<8x32xf32, #tpu.memory_space<vmem>>, vector<8x32xf32>
    tpu.vector_store %arg18[%c0_44, %c0_45], %60 {strides = array<i32>} : memref<8x32xf32, #tpu.memory_space<vmem>>, vector<8x32xf32>,
    %c3_i32 = arith.constant 3 : i32
    %62 = arith.cmpi eq, %arg2, %c3_i32 : i32
    %63 = arith.extui %62 : i1 to i32
    %c0_i32_46 = arith.constant 0 : i32
    %64 = arith.cmpi ne, %63, %c0_i32_46 : i32
    scf.if %64 {
      %c0_47 = arith.constant 0 : index
      %c0_48 = arith.constant 0 : index
      %65 = vector.load %arg18[%c0_47, %c0_48] : memref<8x32xf32, #tpu.memory_space<vmem>>, vector<8x32xf32>
      %66 = arith.addf %4, %65 : vector<8x32xf32>
      %c0_49 = arith.constant 0 : index
      %c0_50 = arith.constant 0 : index
      %67 = vector.load %arg14[%c0_49, %c0_50] : memref<1x32xf32, #tpu.memory_space<vmem>>, vector<1x32xf32>
      %68 = vector.broadcast %67 : vector<1x32xf32> to vector<8x32xf32>
      %69 = arith.addf %66, %68 : vector<8x32xf32>
      %cst_51 = arith.constant dense<0.000000e+00> : vector<8xf32>
      %70 = vector.multi_reduction <add>, %69, %cst_51 [1] : vector<8x32xf32> to vector<8xf32>
      %71 = vector.shape_cast %70 : vector<8xf32> to vector<8x1xf32>
      %cst_52 = arith.constant 3.200000e+01 : f32
      %72 = vector.broadcast %cst_52 : f32 to vector<8x1xf32>
      %73 = arith.divf %71, %72 : vector<8x1xf32>
      %74 = vector.broadcast %73 : vector<8x1xf32> to vector<8x32xf32>
      %75 = arith.subf %69, %74 : vector<8x32xf32>
      %76 = arith.mulf %75, %75 : vector<8x32xf32>
      %cst_53 = arith.constant dense<0.000000e+00> : vector<8xf32>
      %77 = vector.multi_reduction <add>, %76, %cst_53 [1] : vector<8x32xf32> to vector<8xf32>
      %78 = vector.shape_cast %77 : vector<8xf32> to vector<8x1xf32>
      %cst_54 = arith.constant 3.200000e+01 : f32
      %79 = vector.broadcast %cst_54 : f32 to vector<8x1xf32>
      %80 = arith.divf %78, %79 : vector<8x1xf32>
      %cst_55 = arith.constant 9.99999974E-6 : f32
      %81 = vector.broadcast %cst_55 : f32 to vector<8x1xf32>
      %82 = arith.addf %80, %81 : vector<8x1xf32>
      %83 = math.rsqrt %82 : vector<8x1xf32>
      %84 = vector.broadcast %83 : vector<8x1xf32> to vector<8x32xf32>
      %85 = arith.mulf %75, %84 : vector<8x32xf32>
      %c0_56 = arith.constant 0 : index
      %c0_57 = arith.constant 0 : index
      %86 = vector.load %arg15[%c0_56, %c0_57] : memref<1x32xf32, #tpu.memory_space<vmem>>, vector<1x32xf32>
      %87 = vector.broadcast %86 : vector<1x32xf32> to vector<8x32xf32>
      %88 = arith.mulf %85, %87 : vector<8x32xf32>
      %c0_58 = arith.constant 0 : index
      %c0_59 = arith.constant 0 : index
      %89 = vector.load %arg16[%c0_58, %c0_59] : memref<1x32xf32, #tpu.memory_space<vmem>>, vector<1x32xf32>
      %90 = vector.broadcast %89 : vector<1x32xf32> to vector<8x32xf32>
      %91 = arith.addf %88, %90 : vector<8x32xf32>
      %c0_60 = arith.constant 0 : index
      %c0_61 = arith.constant 0 : index
      %c0_62 = arith.constant 0 : index
      %92 = vector.load %arg17[%c0_60, %c0_61, %c0_62] : memref<1x8x32xf32, #tpu.memory_space<vmem>>, vector<1x8x32xf32>
      %93 = vector.shape_cast %92 : vector<1x8x32xf32> to vector<8x32xf32>
      %94 = vector.shape_cast %91 : vector<8x32xf32> to vector<1x8x32xf32>
      tpu.vector_store %arg17[%c0_60, %c0_61, %c0_62], %94 {strides = array<i32>} : memref<1x8x32xf32, #tpu.memory_space<vmem>>, vector<1x8x32xf32>,
    } else {
    }
    return
  }
  func.func @transform_0(%arg0: i32, %arg1: i32, %arg2: i32) -> (i32, i32, i32) {
    %c0_i32 = arith.constant 0 : i32
    %c0_i32_0 = arith.constant 0 : i32
    return %arg0, %arg1, %c0_i32 : i32, i32, i32
  }
  func.func @transform_1(%arg0: i32, %arg1: i32, %arg2: i32) -> (i32, i32, i32) {
    %c0_i32 = arith.constant 0 : i32
    %c0_i32_0 = arith.constant 0 : i32
    %c0_i32_1 = arith.constant 0 : i32
    return %arg0, %c0_i32, %c0_i32_0 : i32, i32, i32
  }
  func.func @transform_2(%arg0: i32, %arg1: i32, %arg2: i32) -> (i32, i32, i32) {
    %c0_i32 = arith.constant 0 : i32
    %c0_i32_0 = arith.constant 0 : i32
    %c0_i32_1 = arith.constant 0 : i32
    return %arg0, %c0_i32, %c0_i32_0 : i32, i32, i32
  }
  func.func @transform_3(%arg0: i32, %arg1: i32, %arg2: i32) -> (i32, i32, i32, i32) {
    %c0_i32 = arith.constant 0 : i32
    %c0_i32_0 = arith.constant 0 : i32
    return %arg0, %arg2, %arg1, %c0_i32 : i32, i32, i32, i32
  }
  func.func @transform_4(%arg0: i32, %arg1: i32, %arg2: i32) -> (i32, i32, i32) {
    %c0_i32 = arith.constant 0 : i32
    %c0_i32_0 = arith.constant 0 : i32
    %c0_i32_1 = arith.constant 0 : i32
    return %arg2, %c0_i32, %c0_i32_0 : i32, i32, i32
  }
  func.func @transform_5(%arg0: i32, %arg1: i32, %arg2: i32) -> (i32, i32, i32) {
    %c0_i32 = arith.constant 0 : i32
    %c0_i32_0 = arith.constant 0 : i32
    %c0_i32_1 = arith.constant 0 : i32
    return %arg2, %c0_i32, %c0_i32_0 : i32, i32, i32
  }
  func.func @transform_6(%arg0: i32, %arg1: i32, %arg2: i32) -> (i32, i32, i32) {
    %c0_i32 = arith.constant 0 : i32
    %c0_i32_0 = arith.constant 0 : i32
    %c0_i32_1 = arith.constant 0 : i32
    return %arg2, %c0_i32, %c0_i32_0 : i32, i32, i32
  }
  func.func @transform_7(%arg0: i32, %arg1: i32, %arg2: i32) -> (i32, i32, i32) {
    %c0_i32 = arith.constant 0 : i32
    %c0_i32_0 = arith.constant 0 : i32
    %c0_i32_1 = arith.constant 0 : i32
    return %arg2, %c0_i32, %c0_i32_0 : i32, i32, i32
  }
  func.func @transform_8(%arg0: i32, %arg1: i32, %arg2: i32) -> (i32, i32, i32) {
    %c0_i32 = arith.constant 0 : i32
    %c0_i32_0 = arith.constant 0 : i32
    %c0_i32_1 = arith.constant 0 : i32
    return %arg2, %c0_i32, %c0_i32_0 : i32, i32, i32
  }
  func.func @transform_9(%arg0: i32, %arg1: i32, %arg2: i32) -> (i32, i32, i32) {
    %c0_i32 = arith.constant 0 : i32
    %c0_i32_0 = arith.constant 0 : i32
    %c0_i32_1 = arith.constant 0 : i32
    return %arg2, %c0_i32, %c0_i32_0 : i32, i32, i32
  }
  func.func @transform_10(%arg0: i32, %arg1: i32, %arg2: i32) -> (i32, i32, i32) {
    %c0_i32 = arith.constant 0 : i32
    %c0_i32_0 = arith.constant 0 : i32
    %c0_i32_1 = arith.constant 0 : i32
    return %arg2, %c0_i32, %c0_i32_0 : i32, i32, i32
  }
  func.func @transform_11(%arg0: i32, %arg1: i32, %arg2: i32) -> (i32, i32) {
    %c0_i32 = arith.constant 0 : i32
    %c0_i32_0 = arith.constant 0 : i32
    %c0_i32_1 = arith.constant 0 : i32
    return %c0_i32, %c0_i32_0 : i32, i32
  }
  func.func @transform_12(%arg0: i32, %arg1: i32, %arg2: i32) -> (i32, i32) {
    %c0_i32 = arith.constant 0 : i32
    %c0_i32_0 = arith.constant 0 : i32
    %c0_i32_1 = arith.constant 0 : i32
    return %c0_i32, %c0_i32_0 : i32, i32
  }
  func.func @transform_13(%arg0: i32, %arg1: i32, %arg2: i32) -> (i32, i32) {
    %c0_i32 = arith.constant 0 : i32
    %c0_i32_0 = arith.constant 0 : i32
    %c0_i32_1 = arith.constant 0 : i32
    return %c0_i32, %c0_i32_0 : i32, i32
  }
  func.func @transform_14(%arg0: i32, %arg1: i32, %arg2: i32) -> (i32, i32, i32) {
    %c0_i32 = arith.constant 0 : i32
    %c0_i32_0 = arith.constant 0 : i32
    return %arg0, %arg1, %c0_i32 : i32, i32, i32
  }
}

</mosaic_0001>

<llo_original>
// kernel: tpu_custom_call.1
$region0: #{tpu_custom_call.1}
  #allocation0 [shape = 'u32[]', space=smem, size = 0x4, offset = 0x4, fixed_abs, tag = 'smem constant byte address 0x4 - core index']
  #allocation1 [shape = 'u32[144,128]{1,0:T(1,128)}', space=vmem, size = 0x12000, scoped, tag = 'internal scratch']
  #allocation2 [shape = 'f32[8,32]{1,0:T(8,128)}', space=vmem, size = 0x1000, scoped, tag = 'scratch operand']
  %s0 = inlined_call_operand.hbm [shape: f32[2,8,32], index: 0, kind: input, shape index: {}]
  %s1 = inlined_call_operand.hbm [shape: f32[2,8,32], index: 1, kind: input, shape index: {}]
  %s2 = inlined_call_operand.hbm [shape: f32[2,8,32], index: 2, kind: input, shape index: {}]
  %s3 = inlined_call_operand.hbm [shape: f32[2,4,8,8], index: 3, kind: input, shape index: {}]
  %s4 = inlined_call_operand.hbm [shape: bf16[4,32,8], index: 4, kind: input, shape index: {}]
  %s5 = inlined_call_operand.hbm [shape: f32[4,1,8], index: 5, kind: input, shape index: {}]
  %s6 = inlined_call_operand.hbm [shape: bf16[4,32,8], index: 6, kind: input, shape index: {}]
  %s7 = inlined_call_operand.hbm [shape: f32[4,1,8], index: 7, kind: input, shape index: {}]
  %s8 = inlined_call_operand.hbm [shape: bf16[4,32,8], index: 8, kind: input, shape index: {}]
  %s9 = inlined_call_operand.hbm [shape: f32[4,1,8], index: 9, kind: input, shape index: {}]
  %s10 = inlined_call_operand.hbm [shape: bf16[4,8,32], index: 10, kind: input, shape index: {}]
  %s11 = inlined_call_operand.hbm [shape: f32[1,32], index: 11, kind: input, shape index: {}]
  %s12 = inlined_call_operand.hbm [shape: f32[1,32], index: 12, kind: input, shape index: {}]
  %s13 = inlined_call_operand.hbm [shape: f32[1,32], index: 13, kind: input, shape index: {}]
  %s14 = inlined_call_operand.hbm [shape: f32[2,8,32], index: 14, kind: output, shape index: {}]
  %s15 = sld [smem:[#allocation0]]
  $region153: #{tpu_custom_call.1} parent=0
    _
  %s17 = ssub.s32 1, %s15
  %s18 = scalar_select 0, %s17, %s15
  $region1: #{tpu_custom_call.1} parent=0
    #allocation3 [shape = 'u8[8192]{0}', space=vmem, size = 0x2000, scoped, tag = 'input window, operand 0']
    #allocation4 [shape = 's32[2]{0}', space=sflag, size = 0x8, scoped, tag = 'scoped memory for tpu_custom_call.1']
    #allocation5 [shape = 's32[2]{0}', space=sflag, size = 0x8, scoped, tag = 'scoped memory for tpu_custom_call.1']
    #allocation6 [shape = 'u8[8192]{0}', space=vmem, size = 0x2000, scoped, tag = 'input window, operand 1']
    #allocation7 [shape = 's32[2]{0}', space=sflag, size = 0x8, scoped, tag = 'scoped memory for tpu_custom_call.1']
    #allocation8 [shape = 'u8[8192]{0}', space=vmem, size = 0x2000, scoped, tag = 'input window, operand 2']
    #allocation9 [shape = 'u8[8192]{0}', space=vmem, size = 0x2000, scoped, tag = 'input window, operand 3']
    #allocation10 [shape = 's32[2]{0}', space=sflag, size = 0x8, scoped, tag = 'scoped memory for tpu_custom_call.1']
    #allocation11 [shape = 'u8[16384]{0}', space=vmem, size = 0x4000, scoped, tag = 'input window, operand 4']
    #allocation12 [shape = 'u8[1024]{0}', space=vmem, size = 0x400, scoped, tag = 'input window, operand 5']
    #allocation13 [shape = 's32[2]{0}', space=sflag, size = 0x8, scoped, tag = 'scoped memory for tpu_custom_call.1']
    #allocation14 [shape = 'u8[16384]{0}', space=vmem, size = 0x4000, scoped, tag = 'input window, operand 6']
    #allocation15 [shape = 'u8[1024]{0}', space=vmem, size = 0x400, scoped, tag = 'input window, operand 7']
    #allocation16 [shape = 's32[2]{0}', space=sflag, size = 0x8, scoped, tag = 'scoped memory for tpu_custom_call.1']
    #allocation17 [shape = 'u8[16384]{0}', space=vmem, size = 0x4000, scoped, tag = 'input window, operand 8']
    #allocation18 [shape = 'u8[1024]{0}', space=vmem, size = 0x400, scoped, tag = 'input window, operand 9']
    #allocation19 [shape = 's32[2]{0}', space=sflag, size = 0x8, scoped, tag = 'scoped memory for tpu_custom_call.1']
    #allocation20 [shape = 'u8[4096]{0}', space=vmem, size = 0x1000, scoped, tag = 'input window, operand 10']
    #allocation21 [shape = 'u8[512]{0}', space=vmem, size = 0x400, scoped, tag = 'input window, operand 11, single buffered']
    #allocation22 [shape = 's32[1]{0}', space=sflag, size = 0x4, scoped, tag = 'scoped memory for tpu_custom_call.1']
    #allocation23 [shape = 'u8[512]{0}', space=vmem, size = 0x400, scoped, tag = 'input window, operand 12, single buffered']
    #allocation24 [shape = 'u8[512]{0}', space=vmem, size = 0x400, scoped, tag = 'input window, operand 13, single buffered']
    #allocation25 [shape = 's32[1]{0}', space=sflag, size = 0x4, scoped, tag = 'scoped memory for tpu_custom_call.1']
    #allocation26 [shape = 'u8[8192]{0}', space=vmem, size = 0x2000, scoped, tag = 'output window, operand 0']
    %19 = vsyncpa [#allocation4], 0
    %s20 = scalar_lea.sflag [#allocation4], 1
    %21 = vsyncpa %s20, 0
    %22 = vsyncpa [#allocation7], 0
    %s23 = scalar_lea.sflag [#allocation7], 1
    %24 = vsyncpa %s23, 0
    %25 = vsyncpa [#allocation10], 0
    %s26 = scalar_lea.sflag [#allocation10], 1
    %27 = vsyncpa %s26, 0
    %28 = vsyncpa [#allocation13], 0
    %s29 = scalar_lea.sflag [#allocation13], 1
    %30 = vsyncpa %s29, 0
    %31 = vsyncpa [#allocation16], 0
    %s32 = scalar_lea.sflag [#allocation16], 1
    %33 = vsyncpa %s32, 0
    %34 = vsyncpa [#allocation19], 0
    %s35 = scalar_lea.sflag [#allocation19], 1
    %36 = vsyncpa %s35, 0
    %37 = vsyncpa [#allocation22], 0
    %38 = vsyncpa [#allocation25], 0
    %39 = vsyncpa [#allocation5], 0
    %s40 = scalar_lea.sflag [#allocation5], 1
    %41 = vsyncpa %s40, 0
    loop: start=0, step=1, limit=10
    $region2: #{tpu_custom_call.1} parent=1 // loop_pre_header
      _
    $region3: #{tpu_custom_call.1} parent=1 // loop_header
      %s43 = sphi 0, %s47
      %p44 = scmp.ge.s32.totalorder %s43, 10
      %s50 = sphi 0, %s69
      %s51 = sphi 0, %s65
      %s52 = sphi 0, %s61
      %s53 = sphi 0, %s50
      %s54 = sphi 0, %s51
      %s55 = sphi 0, %s52
      %s56 = sphi 0, %s53
      %s57 = sphi 0, %s54
      %s58 = sphi 0, %s55
      %s74 = sphi 0, %s76
      %s77 = sphi 0, %s74
      %s78 = sphi 0, %s77
      %s94 = sphi 0, %s78
      %s100 = sphi 0, %s102
      %s103 = sphi 0, %s100
      %s104 = sphi 0, %s103
      %s120 = sphi 0, %s104
      %s126 = sphi 0, %s128
      %s129 = sphi 0, %s126
      %s130 = sphi 0, %s129
      %s146 = sphi 0, %s130
      %s156 = sphi 0, %s158
      %s159 = sphi 0, %s156
      %s160 = sphi 0, %s159
      %s176 = sphi 0, %s160
      %s182 = sphi 0, %s184
      %s185 = sphi 0, %s182
      %s186 = sphi 0, %s185
      %s202 = sphi 0, %s186
      %s208 = sphi 0, %s210
      %s211 = sphi 0, %s208
      %s212 = sphi 0, %s211
      %s228 = sphi 0, %s212
      %s234 = sphi 0, %s236
      %s237 = sphi 0, %s234
      %s238 = sphi 0, %s237
      %s254 = sphi 0, %s238
      %s260 = sphi 0, %s262
      %s263 = sphi 0, %s260
      %s264 = sphi 0, %s263
      %s280 = sphi 0, %s264
      %s286 = sphi 0, %s288
      %s289 = sphi 0, %s286
      %s290 = sphi 0, %s289
      %s306 = sphi 0, %s290
      %s312 = sphi 0, %s314
      %s315 = sphi 0, %s312
      %s316 = sphi 0, %s315
      %s332 = sphi 0, %s316
      %s338 = sphi 0, %s340
      %s341 = sphi 0, %s338
      %s342 = sphi 0, %s341
      %s358 = sphi 0, %s342
      %s362 = sphi 0, %s362
      %s364 = sphi 0, %s362
      %s365 = sphi 0, %s364
      %s379 = sphi 0, %s365
      %s383 = sphi 0, %s383
      %s385 = sphi 0, %s383
      %s386 = sphi 0, %s385
      %s400 = sphi 0, %s386
      %s404 = sphi 0, %s404
      %s406 = sphi 0, %s404
      %s407 = sphi 0, %s406
      %s421 = sphi 0, %s407
      %s429 = sphi 0, %s431
      %s432 = sphi 0, %s429
      %s433 = sphi 0, %s432
      %s449 = sphi 0, %s433
    $region4: #{tpu_custom_call.1} parent=1 // loop_header_branch
      %46 = sbr.rel (%p44) target = $region8
    $region5: #{tpu_custom_call.1} parent=1 // loop_body
      %s48 = ssub.s32 %s43, 1
      %s49 = ssub.s32 %s43, 2
      %s59 = sadd.s32 1, %s52
      %p60 = scmp.ge.s32.totalorder %s59, 4
      %s61 = scalar_select %p60, 0, %s59
      %s62 = sadd.s32 1, %s51
      %s63 = scalar_select %p60, %s62, %s51
      %p64 = scmp.ge.s32.totalorder %s63, 1
      %s65 = scalar_select %p64, 0, %s63
      %s66 = sadd.s32 1, %s50
      %s67 = scalar_select %p64, %s66, %s50
      %p68 = scmp.ge.s32.totalorder %s67, 2
      %s69 = scalar_select %p68, 0, %s67
      %s70 = ssub.s32 %s50, %s69
      %s71 = ssub.s32 %s51, %s65
      %s72 = sor.u32 %s70, %s71
      %p73 = scmp.eq.s32.totalorder %s72, 0
      %s75 = sadd.s32 %s74, 1
      %s76 = scalar_select %p73, %s74, %s75
      %p79 = pneg %p73
      %p80 = scmp.eq.s32.totalorder %s43, 7
      %p81 = por %p79, %p80
      %p82 = scmp.ne.s32.totalorder %s74, %s77
      %p83 = scmp.eq.s32.totalorder %s43, 0
      %p84 = por %p82, %p83
      %p85 = scmp.ne.s32.totalorder %s74, %s77
      %p86 = scmp.eq.s32.totalorder %s48, 7
      %p87 = por %p85, %p86
      %p88 = scmp.ne.s32.totalorder %s77, %s78
      %p89 = scmp.eq.s32.totalorder %s48, 0
      %p90 = por %p88, %p89
      %p91 = scmp.ne.s32.totalorder %s77, %s78
      %p92 = scmp.eq.s32.totalorder %s49, 7
      %p93 = por %p91, %p92
      %p95 = scmp.ne.s32.totalorder %s78, %s94
      %p96 = scmp.eq.s32.totalorder %s49, 0
      %p97 = por %p95, %p96
      %s98 = ssub.s32 %s50, %s69
      %p99 = scmp.eq.s32.totalorder %s98, 0
      %s101 = sadd.s32 %s100, 1
      %s102 = scalar_select %p99, %s100, %s101
      %p105 = pneg %p99
      %p106 = scmp.eq.s32.totalorder %s43, 7
      %p107 = por %p105, %p106
      %p108 = scmp.ne.s32.totalorder %s100, %s103
      %p109 = scmp.eq.s32.totalorder %s43, 0
      %p110 = por %p108, %p109
      %p111 = scmp.ne.s32.totalorder %s100, %s103
      %p112 = scmp.eq.s32.totalorder %s48, 7
      %p113 = por %p111, %p112
      %p114 = scmp.ne.s32.totalorder %s103, %s104
      %p115 = scmp.eq.s32.totalorder %s48, 0
      %p116 = por %p114, %p115
      %p117 = scmp.ne.s32.totalorder %s103, %s104
      %p118 = scmp.eq.s32.totalorder %s49, 7
      %p119 = por %p117, %p118
      %p121 = scmp.ne.s32.totalorder %s104, %s120
      %p122 = scmp.eq.s32.totalorder %s49, 0
      %p123 = por %p121, %p122
      %s124 = ssub.s32 %s50, %s69
      %p125 = scmp.eq.s32.totalorder %s124, 0
      %s127 = sadd.s32 %s126, 1
      %s128 = scalar_select %p125, %s126, %s127
      %p131 = pneg %p125
      %p132 = scmp.eq.s32.totalorder %s43, 7
      %p133 = por %p131, %p132
      %p134 = scmp.ne.s32.totalorder %s126, %s129
      %p135 = scmp.eq.s32.totalorder %s43, 0
      %p136 = por %p134, %p135
      %p137 = scmp.ne.s32.totalorder %s126, %s129
      %p138 = scmp.eq.s32.totalorder %s48, 7
      %p139 = por %p137, %p138
      %p140 = scmp.ne.s32.totalorder %s129, %s130
      %p141 = scmp.eq.s32.totalorder %s48, 0
      %p142 = por %p140, %p141
      %p143 = scmp.ne.s32.totalorder %s129, %s130
      %p144 = scmp.eq.s32.totalorder %s49, 7
      %p145 = por %p143, %p144
      %p147 = scmp.ne.s32.totalorder %s130, %s146
      %p148 = scmp.eq.s32.totalorder %s49, 0
      %p149 = por %p147, %p148
      %s150 = ssub.s32 %s50, %s69
      %s151 = ssub.s32 %s52, %s61
      %s152 = sor.u32 %s150, %s151
      %s153 = ssub.s32 %s51, %s65
      %s154 = sor.u32 %s152, %s153
      %p155 = scmp.eq.s32.totalorder %s154, 0
      %s157 = sadd.s32 %s156, 1
      %s158 = scalar_select %p155, %s156, %s157
      %p161 = pneg %p155
      %p162 = scmp.eq.s32.totalorder %s43, 7
      %p163 = por %p161, %p162
      %p164 = scmp.ne.s32.totalorder %s156, %s159
      %p165 = scmp.eq.s32.totalorder %s43, 0
      %p166 = por %p164, %p165
      %p167 = scmp.ne.s32.totalorder %s156, %s159
      %p168 = scmp.eq.s32.totalorder %s48, 7
      %p169 = por %p167, %p168
      %p170 = scmp.ne.s32.totalorder %s159, %s160
      %p171 = scmp.eq.s32.totalorder %s48, 0
      %p172 = por %p170, %p171
      %p173 = scmp.ne.s32.totalorder %s159, %s160
      %p174 = scmp.eq.s32.totalorder %s49, 7
      %p175 = por %p173, %p174
      %p177 = scmp.ne.s32.totalorder %s160, %s176
      %p178 = scmp.eq.s32.totalorder %s49, 0
      %p179 = por %p177, %p178
      %s180 = ssub.s32 %s52, %s61
      %p181 = scmp.eq.s32.totalorder %s180, 0
      %s183 = sadd.s32 %s182, 1
      %s184 = scalar_select %p181, %s182, %s183
      %p187 = pneg %p181
      %p188 = scmp.eq.s32.totalorder %s43, 7
      %p189 = por %p187, %p188
      %p190 = scmp.ne.s32.totalorder %s182, %s185
      %p191 = scmp.eq.s32.totalorder %s43, 0
      %p192 = por %p190, %p191
      %p193 = scmp.ne.s32.totalorder %s182, %s185
      %p194 = scmp.eq.s32.totalorder %s48, 7
      %p195 = por %p193, %p194
      %p196 = scmp.ne.s32.totalorder %s185, %s186
      %p197 = scmp.eq.s32.totalorder %s48, 0
      %p198 = por %p196, %p197
      %p199 = scmp.ne.s32.totalorder %s185, %s186
      %p200 = scmp.eq.s32.totalorder %s49, 7
      %p201 = por %p199, %p200
      %p203 = scmp.ne.s32.totalorder %s186, %s202
      %p204 = scmp.eq.s32.totalorder %s49, 0
      %p205 = por %p203, %p204
      %s206 = ssub.s32 %s52, %s61
      %p207 = scmp.eq.s32.totalorder %s206, 0
      %s209 = sadd.s32 %s208, 1
      %s210 = scalar_select %p207, %s208, %s209
      %p213 = pneg %p207
      %p214 = scmp.eq.s32.totalorder %s43, 7
      %p215 = por %p213, %p214
      %p216 = scmp.ne.s32.totalorder %s208, %s211
      %p217 = scmp.eq.s32.totalorder %s43, 0
      %p218 = por %p216, %p217
      %p219 = scmp.ne.s32.totalorder %s208, %s211
      %p220 = scmp.eq.s32.totalorder %s48, 7
      %p221 = por %p219, %p220
      %p222 = scmp.ne.s32.totalorder %s211, %s212
      %p223 = scmp.eq.s32.totalorder %s48, 0
      %p224 = por %p222, %p223
      %p225 = scmp.ne.s32.totalorder %s211, %s212
      %p226 = scmp.eq.s32.totalorder %s49, 7
      %p227 = por %p225, %p226
      %p229 = scmp.ne.s32.totalorder %s212, %s228
      %p230 = scmp.eq.s32.totalorder %s49, 0
      %p231 = por %p229, %p230
      %s232 = ssub.s32 %s52, %s61
      %p233 = scmp.eq.s32.totalorder %s232, 0
      %s235 = sadd.s32 %s234, 1
      %s236 = scalar_select %p233, %s234, %s235
      %p239 = pneg %p233
      %p240 = scmp.eq.s32.totalorder %s43, 7
      %p241 = por %p239, %p240
      %p242 = scmp.ne.s32.totalorder %s234, %s237
      %p243 = scmp.eq.s32.totalorder %s43, 0
      %p244 = por %p242, %p243
      %p245 = scmp.ne.s32.totalorder %s234, %s237
      %p246 = scmp.eq.s32.totalorder %s48, 7
      %p247 = por %p245, %p246
      %p248 = scmp.ne.s32.totalorder %s237, %s238
      %p249 = scmp.eq.s32.totalorder %s48, 0
      %p250 = por %p248, %p249
      %p251 = scmp.ne.s32.totalorder %s237, %s238
      %p252 = scmp.eq.s32.totalorder %s49, 7
      %p253 = por %p251, %p252
      %p255 = scmp.ne.s32.totalorder %s238, %s254
      %p256 = scmp.eq.s32.totalorder %s49, 0
      %p257 = por %p255, %p256
      %s258 = ssub.s32 %s52, %s61
      %p259 = scmp.eq.s32.totalorder %s258, 0
      %s261 = sadd.s32 %s260, 1
      %s262 = scalar_select %p259, %s260, %s261
      %p265 = pneg %p259
      %p266 = scmp.eq.s32.totalorder %s43, 7
      %p267 = por %p265, %p266
      %p268 = scmp.ne.s32.totalorder %s260, %s263
      %p269 = scmp.eq.s32.totalorder %s43, 0
      %p270 = por %p268, %p269
      %p271 = scmp.ne.s32.totalorder %s260, %s263
      %p272 = scmp.eq.s32.totalorder %s48, 7
      %p273 = por %p271, %p272
      %p274 = scmp.ne.s32.totalorder %s263, %s264
      %p275 = scmp.eq.s32.totalorder %s48, 0
      %p276 = por %p274, %p275
      %p277 = scmp.ne.s32.totalorder %s263, %s264
      %p278 = scmp.eq.s32.totalorder %s49, 7
      %p279 = por %p277, %p278
      %p281 = scmp.ne.s32.totalorder %s264, %s280
      %p282 = scmp.eq.s32.totalorder %s49, 0
      %p283 = por %p281, %p282
      %s284 = ssub.s32 %s52, %s61
      %p285 = scmp.eq.s32.totalorder %s284, 0
      %s287 = sadd.s32 %s286, 1
      %s288 = scalar_select %p285, %s286, %s287
      %p291 = pneg %p285
      %p292 = scmp.eq.s32.totalorder %s43, 7
      %p293 = por %p291, %p292
      %p294 = scmp.ne.s32.totalorder %s286, %s289
      %p295 = scmp.eq.s32.totalorder %s43, 0
      %p296 = por %p294, %p295
      %p297 = scmp.ne.s32.totalorder %s286, %s289
      %p298 = scmp.eq.s32.totalorder %s48, 7
      %p299 = por %p297, %p298
      %p300 = scmp.ne.s32.totalorder %s289, %s290
      %p301 = scmp.eq.s32.totalorder %s48, 0
      %p302 = por %p300, %p301
      %p303 = scmp.ne.s32.totalorder %s289, %s290
      %p304 = scmp.eq.s32.totalorder %s49, 7
      %p305 = por %p303, %p304
      %p307 = scmp.ne.s32.totalorder %s290, %s306
      %p308 = scmp.eq.s32.totalorder %s49, 0
      %p309 = por %p307, %p308
      %s310 = ssub.s32 %s52, %s61
      %p311 = scmp.eq.s32.totalorder %s310, 0
      %s313 = sadd.s32 %s312, 1
      %s314 = scalar_select %p311, %s312, %s313
      %p317 = pneg %p311
      %p318 = scmp.eq.s32.totalorder %s43, 7
      %p319 = por %p317, %p318
      %p320 = scmp.ne.s32.totalorder %s312, %s315
      %p321 = scmp.eq.s32.totalorder %s43, 0
      %p322 = por %p320, %p321
      %p323 = scmp.ne.s32.totalorder %s312, %s315
      %p324 = scmp.eq.s32.totalorder %s48, 7
      %p325 = por %p323, %p324
      %p326 = scmp.ne.s32.totalorder %s315, %s316
      %p327 = scmp.eq.s32.totalorder %s48, 0
      %p328 = por %p326, %p327
      %p329 = scmp.ne.s32.totalorder %s315, %s316
      %p330 = scmp.eq.s32.totalorder %s49, 7
      %p331 = por %p329, %p330
      %p333 = scmp.ne.s32.totalorder %s316, %s332
      %p334 = scmp.eq.s32.totalorder %s49, 0
      %p335 = por %p333, %p334
      %s336 = ssub.s32 %s52, %s61
      %p337 = scmp.eq.s32.totalorder %s336, 0
      %s339 = sadd.s32 %s338, 1
      %s340 = scalar_select %p337, %s338, %s339
      %p343 = pneg %p337
      %p344 = scmp.eq.s32.totalorder %s43, 7
      %p345 = por %p343, %p344
      %p346 = scmp.ne.s32.totalorder %s338, %s341
      %p347 = scmp.eq.s32.totalorder %s43, 0
      %p348 = por %p346, %p347
      %p349 = scmp.ne.s32.totalorder %s338, %s341
      %p350 = scmp.eq.s32.totalorder %s48, 7
      %p351 = por %p349, %p350
      %p352 = scmp.ne.s32.totalorder %s341, %s342
      %p353 = scmp.eq.s32.totalorder %s48, 0
      %p354 = por %p352, %p353
      %p355 = scmp.ne.s32.totalorder %s341, %s342
      %p356 = scmp.eq.s32.totalorder %s49, 7
      %p357 = por %p355, %p356
      %p359 = scmp.ne.s32.totalorder %s342, %s358
      %p360 = scmp.eq.s32.totalorder %s49, 0
      %p361 = por %p359, %p360
      %s363 = sadd.s32 %s362, 1
      %p366 = scmp.eq.s32.totalorder %s43, 7
      %p367 = scmp.ne.s32.totalorder %s362, %s364
      %p368 = scmp.eq.s32.totalorder %s43, 0
      %p369 = por %p367, %p368
      %p370 = scmp.ne.s32.totalorder %s362, %s364
      %p371 = scmp.eq.s32.totalorder %s48, 7
      %p372 = por %p370, %p371
      %p373 = scmp.ne.s32.totalorder %s364, %s365
      %p374 = scmp.eq.s32.totalorder %s48, 0
      %p375 = por %p373, %p374
      %p376 = scmp.ne.s32.totalorder %s364, %s365
      %p377 = scmp.eq.s32.totalorder %s49, 7
      %p378 = por %p376, %p377
      %p380 = scmp.ne.s32.totalorder %s365, %s379
      %p381 = scmp.eq.s32.totalorder %s49, 0
      %p382 = por %p380, %p381
      %s384 = sadd.s32 %s383, 1
      %p387 = scmp.eq.s32.totalorder %s43, 7
      %p388 = scmp.ne.s32.totalorder %s383, %s385
      %p389 = scmp.eq.s32.totalorder %s43, 0
      %p390 = por %p388, %p389
      %p391 = scmp.ne.s32.totalorder %s383, %s385
      %p392 = scmp.eq.s32.totalorder %s48, 7
      %p393 = por %p391, %p392
      %p394 = scmp.ne.s32.totalorder %s385, %s386
      %p395 = scmp.eq.s32.totalorder %s48, 0
      %p396 = por %p394, %p395
      %p397 = scmp.ne.s32.totalorder %s385, %s386
      %p398 = scmp.eq.s32.totalorder %s49, 7
      %p399 = por %p397, %p398
      %p401 = scmp.ne.s32.totalorder %s386, %s400
      %p402 = scmp.eq.s32.totalorder %s49, 0
      %p403 = por %p401, %p402
      %s405 = sadd.s32 %s404, 1
      %p408 = scmp.eq.s32.totalorder %s43, 7
      %p409 = scmp.ne.s32.totalorder %s404, %s406
      %p410 = scmp.eq.s32.totalorder %s43, 0
      %p411 = por %p409, %p410
      %p412 = scmp.ne.s32.totalorder %s404, %s406
      %p413 = scmp.eq.s32.totalorder %s48, 7
      %p414 = por %p412, %p413
      %p415 = scmp.ne.s32.totalorder %s406, %s407
      %p416 = scmp.eq.s32.totalorder %s48, 0
      %p417 = por %p415, %p416
      %p418 = scmp.ne.s32.totalorder %s406, %s407
      %p419 = scmp.eq.s32.totalorder %s49, 7
      %p420 = por %p418, %p419
      %p422 = scmp.ne.s32.totalorder %s407, %s421
      %p423 = scmp.eq.s32.totalorder %s49, 0
      %p424 = por %p422, %p423
      %s425 = ssub.s32 %s50, %s69
      %s426 = ssub.s32 %s51, %s65
      %s427 = sor.u32 %s425, %s426
      %p428 = scmp.eq.s32.totalorder %s427, 0
      %s430 = sadd.s32 %s429, 1
      %s431 = scalar_select %p428, %s429, %s430
      %p434 = pneg %p428
      %p435 = scmp.eq.s32.totalorder %s43, 7
      %p436 = por %p434, %p435
      %p437 = scmp.ne.s32.totalorder %s429, %s432
      %p438 = scmp.eq.s32.totalorder %s43, 0
      %p439 = por %p437, %p438
      %p440 = scmp.ne.s32.totalorder %s429, %s432
      %p441 = scmp.eq.s32.totalorder %s48, 7
      %p442 = por %p440, %p441
      %p443 = scmp.ne.s32.totalorder %s432, %s433
      %p444 = scmp.eq.s32.totalorder %s48, 0
      %p445 = por %p443, %p444
      %p446 = scmp.ne.s32.totalorder %s432, %s433
      %p447 = scmp.eq.s32.totalorder %s49, 7
      %p448 = por %p446, %p447
      %p450 = scmp.ne.s32.totalorder %s433, %s449
      %p451 = scmp.eq.s32.totalorder %s49, 0
      %p452 = por %p450, %p451
      %p453 = scmp.le.s32.totalorder 1, %s43
      %p454 = scmp.lt.s32.totalorder %s43, 9
      %p455 = pnand %p453, %p454
      %p456 = pneg %p455
      // Predicated region
      $region9: #{tpu_custom_call.1} parent=5 // pred_check
        _
      $region10: #{tpu_custom_call.1} parent=5 // pred_check_branch
        %458 = sbr.rel (%p455) target = $region12
      $region11: #{tpu_custom_call.1} parent=5 // pred_region
        %s459 = ssub.s32 %s43, 1
        // Predicated region
        $region13: #{tpu_custom_call.1} parent=11 // pred_check
          %p460 = pneg %p375
        $region14: #{tpu_custom_call.1} parent=11 // pred_check_branch
          %462 = sbr.rel (%p460) target = $region16
        $region15: #{tpu_custom_call.1} parent=11 // pred_region
          %s464 = ssub.s32 16, 16
          %465 = vsyncadd [#allocation22], %s464
          %s467 = sshll.u32 [#allocation21], 4
          %s468 = int_to_ptr.vmem [resolvable:$true] %s467
          %470 = dma.hbm_to_vmem [thread:$0]  %s11, 16, %s468, [#allocation22]
        $region16: #{tpu_custom_call.1} parent=11 // pred_fallthru
          _
        // Predicated region
        $region17: #{tpu_custom_call.1} parent=11 // pred_check
          %p471 = pneg %p396
        $region18: #{tpu_custom_call.1} parent=11 // pred_check_branch
          %473 = sbr.rel (%p471) target = $region20
        $region19: #{tpu_custom_call.1} parent=11 // pred_region
          %s475 = ssub.s32 16, 16
          %476 = vsyncadd [#allocation22], %s475
          %s478 = sshll.u32 [#allocation23], 4
          %s479 = int_to_ptr.vmem [resolvable:$true] %s478
          %481 = dma.hbm_to_vmem [thread:$0]  %s12, 16, %s479, [#allocation22]
        $region20: #{tpu_custom_call.1} parent=11 // pred_fallthru
          _
        // Predicated region
        $region21: #{tpu_custom_call.1} parent=11 // pred_check
          %p482 = pneg %p417
        $region22: #{tpu_custom_call.1} parent=11 // pred_check_branch
          %484 = sbr.rel (%p482) target = $region24
        $region23: #{tpu_custom_call.1} parent=11 // pred_region
          %s486 = ssub.s32 16, 16
          %487 = vsyncadd [#allocation25], %s486
          %s489 = sshll.u32 [#allocation24], 4
          %s490 = int_to_ptr.vmem [resolvable:$true] %s489
          %492 = dma.hbm_to_vmem [thread:$0]  %s13, 16, %s490, [#allocation25]
        $region24: #{tpu_custom_call.1} parent=11 // pred_fallthru
          _
      $region12: #{tpu_custom_call.1} parent=5 // pred_fallthru
        _
      %p493 = scmp.lt.s32.totalorder %s43, 8
      // Predicated region
      $region25: #{tpu_custom_call.1} parent=5 // pred_check
        %p494 = pneg %p493
      $region26: #{tpu_custom_call.1} parent=5 // pred_check_branch
        %496 = sbr.rel (%p494) target = $region28
      $region27: #{tpu_custom_call.1} parent=5 // pred_region
        // Predicated region
        $region29: #{tpu_custom_call.1} parent=27 // pred_check
          %p497 = pneg %p84
        $region30: #{tpu_custom_call.1} parent=27 // pred_check_branch
          %499 = sbr.rel (%p497) target = $region32
        $region31: #{tpu_custom_call.1} parent=27 // pred_region
          %s500 = sand.u32 %s74, 1
          %s501 = scalar_lea.sflag [#allocation4], %s500
          %s502 = sand.u32 %s74, 1
          %s503 = smul.addr %s502, 8
          %s504 = scalar_lea.vmem [#allocation3], %s503
          %s506 = ssub.s32 128, 128
          %507 = vsyncadd %s501, %s506
          %s508 = sadd.s32 %s51, %s50
          %s509 = smul.addr %s508, 128
          %s510 = scalar_lea.hbm %s0, %s509
          %s512 = sshll.u32 %s504, 4
          %s513 = int_to_ptr.vmem [resolvable:$true] %s512
          %515 = dma.hbm_to_vmem [thread:$0]  %s510, 128, %s513, %s501
        $region32: #{tpu_custom_call.1} parent=27 // pred_fallthru
          _
        // Predicated region
        $region33: #{tpu_custom_call.1} parent=27 // pred_check
          %p516 = pneg %p110
        $region34: #{tpu_custom_call.1} parent=27 // pred_check_branch
          %518 = sbr.rel (%p516) target = $region36
        $region35: #{tpu_custom_call.1} parent=27 // pred_region
          %s519 = sand.u32 %s43, 1
          %s520 = scalar_lea.sflag [#allocation7], %s519
          %s521 = sand.u32 %s100, 1
          %s522 = smul.addr %s521, 8
          %s523 = scalar_lea.vmem [#allocation6], %s522
          %s525 = ssub.s32 128, 128
          %526 = vsyncadd %s520, %s525
          %s527 = smul.addr %s50, 128
          %s528 = scalar_lea.hbm %s1, %s527
          %s530 = sshll.u32 %s523, 4
          %s531 = int_to_ptr.vmem [resolvable:$true] %s530
          %533 = dma.hbm_to_vmem [thread:$0]  %s528, 128, %s531, %s520
        $region36: #{tpu_custom_call.1} parent=27 // pred_fallthru
          _
        // Predicated region
        $region37: #{tpu_custom_call.1} parent=27 // pred_check
          %p534 = pneg %p136
        $region38: #{tpu_custom_call.1} parent=27 // pred_check_branch
          %536 = sbr.rel (%p534) target = $region40
        $region39: #{tpu_custom_call.1} parent=27 // pred_region
          %s537 = sand.u32 %s43, 1
          %s538 = scalar_lea.sflag [#allocation7], %s537
          %s539 = sand.u32 %s126, 1
          %s540 = smul.addr %s539, 8
          %s541 = scalar_lea.vmem [#allocation8], %s540
          %s543 = ssub.s32 128, 128
          %544 = vsyncadd %s538, %s543
          %s545 = smul.addr %s50, 128
          %s546 = scalar_lea.hbm %s2, %s545
          %s548 = sshll.u32 %s541, 4
          %s549 = int_to_ptr.vmem [resolvable:$true] %s548
          %551 = dma.hbm_to_vmem [thread:$0]  %s546, 128, %s549, %s538
        $region40: #{tpu_custom_call.1} parent=27 // pred_fallthru
          _
        // Predicated region
        $region41: #{tpu_custom_call.1} parent=27 // pred_check
          %p552 = pneg %p166
        $region42: #{tpu_custom_call.1} parent=27 // pred_check_branch
          %554 = sbr.rel (%p552) target = $region44
        $region43: #{tpu_custom_call.1} parent=27 // pred_region
          %s555 = sand.u32 %s43, 1
          %s556 = scalar_lea.sflag [#allocation10], %s555
          %s557 = sand.u32 %s156, 1
          %s558 = smul.addr %s557, 8
          %s559 = scalar_lea.vmem [#allocation9], %s558
          %s561 = ssub.s32 128, 128
          %562 = vsyncadd %s556, %s561
          %s563 = sadd.s32 %s51, %s52
          %s564 = smul.addr %s50, 4
          %s565 = sadd.s32 %s563, %s564
          %s566 = smul.addr %s565, 128
          %s567 = scalar_lea.hbm %s3, %s566
          %s569 = sshll.u32 %s559, 4
          %s570 = int_to_ptr.vmem [resolvable:$true] %s569
          %572 = dma.hbm_to_vmem [thread:$0]  %s567, 128, %s570, %s556
        $region44: #{tpu_custom_call.1} parent=27 // pred_fallthru
          _
        // Predicated region
        $region45: #{tpu_custom_call.1} parent=27 // pred_check
          %p573 = pneg %p192
        $region46: #{tpu_custom_call.1} parent=27 // pred_check_branch
          %575 = sbr.rel (%p573) target = $region48
        $region47: #{tpu_custom_call.1} parent=27 // pred_region
          %s576 = sand.u32 %s43, 1
          %s577 = scalar_lea.sflag [#allocation10], %s576
          %s578 = sand.u32 %s182, 1
          %s579 = smul.addr %s578, 16
          %s580 = scalar_lea.vmem [#allocation11], %s579
          %s582 = ssub.s32 256, 256
          %583 = vsyncadd %s577, %s582
          %s584 = smul.addr %s52, 4
          %s585 = smul.addr %s584, 64
          %s586 = scalar_lea.hbm %s4, %s585
          %s587 = sshll.u32 %s580, 4
          %s588 = int_to_ptr.vmem [resolvable:$true] %s587
          %593 = dma.hbm_to_vmem [thread:$0]  %s586, 256, %s588, %s577, 64, 64, 4
        $region48: #{tpu_custom_call.1} parent=27 // pred_fallthru
          _
        // Predicated region
        $region49: #{tpu_custom_call.1} parent=27 // pred_check
          %p594 = pneg %p218
        $region50: #{tpu_custom_call.1} parent=27 // pred_check_branch
          %596 = sbr.rel (%p594) target = $region52
        $region51: #{tpu_custom_call.1} parent=27 // pred_region
          %s597 = sand.u32 %s43, 1
          %s598 = scalar_lea.sflag [#allocation13], %s597
          %s599 = sand.u32 %s208, 1
          %s600 = scalar_lea.vmem [#allocation12], %s599
          %s602 = ssub.s32 16, 16
          %603 = vsyncadd %s598, %s602
          %s604 = smul.addr %s52, 16
          %s605 = scalar_lea.hbm %s5, %s604
          %s607 = sshll.u32 %s600, 4
          %s608 = int_to_ptr.vmem [resolvable:$true] %s607
          %610 = dma.hbm_to_vmem [thread:$0]  %s605, 16, %s608, %s598
        $region52: #{tpu_custom_call.1} parent=27 // pred_fallthru
          _
        // Predicated region
        $region53: #{tpu_custom_call.1} parent=27 // pred_check
          %p611 = pneg %p244
        $region54: #{tpu_custom_call.1} parent=27 // pred_check_branch
          %613 = sbr.rel (%p611) target = $region56
        $region55: #{tpu_custom_call.1} parent=27 // pred_region
          %s614 = sand.u32 %s43, 1
          %s615 = scalar_lea.sflag [#allocation13], %s614
          %s616 = sand.u32 %s234, 1
          %s617 = smul.addr %s616, 16
          %s618 = scalar_lea.vmem [#allocation14], %s617
          %s620 = ssub.s32 256, 256
          %621 = vsyncadd %s615, %s620
          %s622 = smul.addr %s52, 4
          %s623 = smul.addr %s622, 64
          %s624 = scalar_lea.hbm %s6, %s623
          %s625 = sshll.u32 %s618, 4
          %s626 = int_to_ptr.vmem [resolvable:$true] %s625
          %631 = dma.hbm_to_vmem [thread:$0]  %s624, 256, %s626, %s615, 64, 64, 4
        $region56: #{tpu_custom_call.1} parent=27 // pred_fallthru
          _
        // Predicated region
        $region57: #{tpu_custom_call.1} parent=27 // pred_check
          %p632 = pneg %p270
        $region58: #{tpu_custom_call.1} parent=27 // pred_check_branch
          %634 = sbr.rel (%p632) target = $region60
        $region59: #{tpu_custom_call.1} parent=27 // pred_region
          %s635 = sand.u32 %s43, 1
          %s636 = scalar_lea.sflag [#allocation16], %s635
          %s637 = sand.u32 %s260, 1
          %s638 = scalar_lea.vmem [#allocation15], %s637
          %s640 = ssub.s32 16, 16
          %641 = vsyncadd %s636, %s640
          %s642 = smul.addr %s52, 16
          %s643 = scalar_lea.hbm %s7, %s642
          %s645 = sshll.u32 %s638, 4
          %s646 = int_to_ptr.vmem [resolvable:$true] %s645
          %648 = dma.hbm_to_vmem [thread:$0]  %s643, 16, %s646, %s636
        $region60: #{tpu_custom_call.1} parent=27 // pred_fallthru
          _
        // Predicated region
        $region61: #{tpu_custom_call.1} parent=27 // pred_check
          %p649 = pneg %p296
        $region62: #{tpu_custom_call.1} parent=27 // pred_check_branch
          %651 = sbr.rel (%p649) target = $region64
        $region63: #{tpu_custom_call.1} parent=27 // pred_region
          %s652 = sand.u32 %s43, 1
          %s653 = scalar_lea.sflag [#allocation16], %s652
          %s654 = sand.u32 %s286, 1
          %s655 = smul.addr %s654, 16
          %s656 = scalar_lea.vmem [#allocation17], %s655
          %s658 = ssub.s32 256, 256
          %659 = vsyncadd %s653, %s658
          %s660 = smul.addr %s52, 4
          %s661 = smul.addr %s660, 64
          %s662 = scalar_lea.hbm %s8, %s661
          %s663 = sshll.u32 %s656, 4
          %s664 = int_to_ptr.vmem [resolvable:$true] %s663
          %669 = dma.hbm_to_vmem [thread:$0]  %s662, 256, %s664, %s653, 64, 64, 4
        $region64: #{tpu_custom_call.1} parent=27 // pred_fallthru
          _
        // Predicated region
        $region65: #{tpu_custom_call.1} parent=27 // pred_check
          %p670 = pneg %p322
        $region66: #{tpu_custom_call.1} parent=27 // pred_check_branch
          %672 = sbr.rel (%p670) target = $region68
        $region67: #{tpu_custom_call.1} parent=27 // pred_region
          %s673 = sand.u32 %s43, 1
          %s674 = scalar_lea.sflag [#allocation19], %s673
          %s675 = sand.u32 %s312, 1
          %s676 = scalar_lea.vmem [#allocation18], %s675
          %s678 = ssub.s32 16, 16
          %679 = vsyncadd %s674, %s678
          %s680 = smul.addr %s52, 16
          %s681 = scalar_lea.hbm %s9, %s680
          %s683 = sshll.u32 %s676, 4
          %s684 = int_to_ptr.vmem [resolvable:$true] %s683
          %686 = dma.hbm_to_vmem [thread:$0]  %s681, 16, %s684, %s674
        $region68: #{tpu_custom_call.1} parent=27 // pred_fallthru
          _
        // Predicated region
        $region69: #{tpu_custom_call.1} parent=27 // pred_check
          %p687 = pneg %p348
        $region70: #{tpu_custom_call.1} parent=27 // pred_check_branch
          %689 = sbr.rel (%p687) target = $region72
        $region71: #{tpu_custom_call.1} parent=27 // pred_region
          %s690 = sand.u32 %s43, 1
          %s691 = scalar_lea.sflag [#allocation19], %s690
          %s692 = sand.u32 %s338, 1
          %s693 = smul.addr %s692, 4
          %s694 = scalar_lea.vmem [#allocation20], %s693
          %s696 = ssub.s32 64, 64
          %697 = vsyncadd %s691, %s696
          %s698 = smul.addr %s52, 64
          %s699 = scalar_lea.hbm %s10, %s698
          %s701 = sshll.u32 %s694, 4
          %s702 = int_to_ptr.vmem [resolvable:$true] %s701
          %704 = dma.hbm_to_vmem [thread:$0]  %s699, 64, %s702, %s691
        $region72: #{tpu_custom_call.1} parent=27 // pred_fallthru
          _
      $region28: #{tpu_custom_call.1} parent=5 // pred_fallthru
        _
      %p705 = scmp.le.s32.totalorder 1, %s43
      %p706 = scmp.lt.s32.totalorder %s43, 9
      %p707 = pnand %p705, %p706
      %p708 = pneg %p707
      // Predicated region
      $region73: #{tpu_custom_call.1} parent=5 // pred_check
        _
      $region74: #{tpu_custom_call.1} parent=5 // pred_check_branch
        %710 = sbr.rel (%p707) target = $region76
      $region75: #{tpu_custom_call.1} parent=5 // pred_region
        %s711 = ssub.s32 %s43, 1
        %s712 = sand.u32 %s77, 1
        %s713 = scalar_lea.sflag [#allocation4], %s712
        %s714 = sand.u32 %s77, 1
        %s715 = smul.addr %s714, 8
        %s716 = scalar_lea.vmem [#allocation3], %s715
        // Predicated region
        $region77: #{tpu_custom_call.1} parent=75 // pred_check
          %p717 = pneg %p90
        $region78: #{tpu_custom_call.1} parent=75 // pred_check_branch
          %719 = sbr.rel (%p717) target = $region80
        $region79: #{tpu_custom_call.1} parent=75 // pred_region
          %720 = dma.done %s713, 128
        $region80: #{tpu_custom_call.1} parent=75 // pred_fallthru
          _
        %s721 = sand.u32 %s48, 1
        %s722 = scalar_lea.sflag [#allocation7], %s721
        %s723 = sand.u32 %s103, 1
        %s724 = smul.addr %s723, 8
        %s725 = scalar_lea.vmem [#allocation6], %s724
        // Predicated region
        $region81: #{tpu_custom_call.1} parent=75 // pred_check
          %p726 = pneg %p116
        $region82: #{tpu_custom_call.1} parent=75 // pred_check_branch
          %728 = sbr.rel (%p726) target = $region84
        $region83: #{tpu_custom_call.1} parent=75 // pred_region
          %729 = dma.done %s722, 128
        $region84: #{tpu_custom_call.1} parent=75 // pred_fallthru
          _
        %s730 = sand.u32 %s48, 1
        %s731 = scalar_lea.sflag [#allocation7], %s730
        %s732 = sand.u32 %s129, 1
        %s733 = smul.addr %s732, 8
        %s734 = scalar_lea.vmem [#allocation8], %s733
        // Predicated region
        $region85: #{tpu_custom_call.1} parent=75 // pred_check
          %p735 = pneg %p142
        $region86: #{tpu_custom_call.1} parent=75 // pred_check_branch
          %737 = sbr.rel (%p735) target = $region88
        $region87: #{tpu_custom_call.1} parent=75 // pred_region
          %738 = dma.done %s731, 128
        $region88: #{tpu_custom_call.1} parent=75 // pred_fallthru
          _
        %s739 = sand.u32 %s48, 1
        %s740 = scalar_lea.sflag [#allocation10], %s739
        %s741 = sand.u32 %s159, 1
        %s742 = smul.addr %s741, 8
        %s743 = scalar_lea.vmem [#allocation9], %s742
        // Predicated region
        $region89: #{tpu_custom_call.1} parent=75 // pred_check
          %p744 = pneg %p172
        $region90: #{tpu_custom_call.1} parent=75 // pred_check_branch
          %746 = sbr.rel (%p744) target = $region92
        $region91: #{tpu_custom_call.1} parent=75 // pred_region
          %747 = dma.done %s740, 128
        $region92: #{tpu_custom_call.1} parent=75 // pred_fallthru
          _
        %s748 = sand.u32 %s48, 1
        %s749 = scalar_lea.sflag [#allocation10], %s748
        %s750 = sand.u32 %s185, 1
        %s751 = smul.addr %s750, 16
        %s752 = scalar_lea.vmem [#allocation11], %s751
        // Predicated region
        $region93: #{tpu_custom_call.1} parent=75 // pred_check
          %p753 = pneg %p198
        $region94: #{tpu_custom_call.1} parent=75 // pred_check_branch
          %755 = sbr.rel (%p753) target = $region96
        $region95: #{tpu_custom_call.1} parent=75 // pred_region
          %756 = dma.done %s749, 256
        $region96: #{tpu_custom_call.1} parent=75 // pred_fallthru
          _
        %s757 = sand.u32 %s48, 1
        %s758 = scalar_lea.sflag [#allocation13], %s757
        %s759 = sand.u32 %s211, 1
        %s760 = scalar_lea.vmem [#allocation12], %s759
        // Predicated region
        $region97: #{tpu_custom_call.1} parent=75 // pred_check
          %p761 = pneg %p224
        $region98: #{tpu_custom_call.1} parent=75 // pred_check_branch
          %763 = sbr.rel (%p761) target = $region100
        $region99: #{tpu_custom_call.1} parent=75 // pred_region
          %764 = dma.done %s758, 16
        $region100: #{tpu_custom_call.1} parent=75 // pred_fallthru
          _
        %s765 = sand.u32 %s48, 1
        %s766 = scalar_lea.sflag [#allocation13], %s765
        %s767 = sand.u32 %s237, 1
        %s768 = smul.addr %s767, 16
        %s769 = scalar_lea.vmem [#allocation14], %s768
        // Predicated region
        $region101: #{tpu_custom_call.1} parent=75 // pred_check
          %p770 = pneg %p250
        $region102: #{tpu_custom_call.1} parent=75 // pred_check_branch
          %772 = sbr.rel (%p770) target = $region104
        $region103: #{tpu_custom_call.1} parent=75 // pred_region
          %773 = dma.done %s766, 256
        $region104: #{tpu_custom_call.1} parent=75 // pred_fallthru
          _
        %s774 = sand.u32 %s48, 1
        %s775 = scalar_lea.sflag [#allocation16], %s774
        %s776 = sand.u32 %s263, 1
        %s777 = scalar_lea.vmem [#allocation15], %s776
        // Predicated region
        $region105: #{tpu_custom_call.1} parent=75 // pred_check
          %p778 = pneg %p276
        $region106: #{tpu_custom_call.1} parent=75 // pred_check_branch
          %780 = sbr.rel (%p778) target = $region108
        $region107: #{tpu_custom_call.1} parent=75 // pred_region
          %781 = dma.done %s775, 16
        $region108: #{tpu_custom_call.1} parent=75 // pred_fallthru
          _
        %s782 = sand.u32 %s48, 1
        %s783 = scalar_lea.sflag [#allocation16], %s782
        %s784 = sand.u32 %s289, 1
        %s785 = smul.addr %s784, 16
        %s786 = scalar_lea.vmem [#allocation17], %s785
        // Predicated region
        $region109: #{tpu_custom_call.1} parent=75 // pred_check
          %p787 = pneg %p302
        $region110: #{tpu_custom_call.1} parent=75 // pred_check_branch
          %789 = sbr.rel (%p787) target = $region112
        $region111: #{tpu_custom_call.1} parent=75 // pred_region
          %790 = dma.done %s783, 256
        $region112: #{tpu_custom_call.1} parent=75 // pred_fallthru
          _
        %s791 = sand.u32 %s48, 1
        %s792 = scalar_lea.sflag [#allocation19], %s791
        %s793 = sand.u32 %s315, 1
        %s794 = scalar_lea.vmem [#allocation18], %s793
        // Predicated region
        $region113: #{tpu_custom_call.1} parent=75 // pred_check
          %p795 = pneg %p328
        $region114: #{tpu_custom_call.1} parent=75 // pred_check_branch
          %797 = sbr.rel (%p795) target = $region116
        $region115: #{tpu_custom_call.1} parent=75 // pred_region
          %798 = dma.done %s792, 16
        $region116: #{tpu_custom_call.1} parent=75 // pred_fallthru
          _
        %s799 = sand.u32 %s48, 1
        %s800 = scalar_lea.sflag [#allocation19], %s799
        %s801 = sand.u32 %s341, 1
        %s802 = smul.addr %s801, 4
        %s803 = scalar_lea.vmem [#allocation20], %s802
        // Predicated region
        $region117: #{tpu_custom_call.1} parent=75 // pred_check
          %p804 = pneg %p354
        $region118: #{tpu_custom_call.1} parent=75 // pred_check_branch
          %806 = sbr.rel (%p804) target = $region120
        $region119: #{tpu_custom_call.1} parent=75 // pred_region
          %807 = dma.done %s800, 64
        $region120: #{tpu_custom_call.1} parent=75 // pred_fallthru
          _
        // Predicated region
        $region121: #{tpu_custom_call.1} parent=75 // pred_check
          %p808 = pneg %p375
        $region122: #{tpu_custom_call.1} parent=75 // pred_check_branch
          %810 = sbr.rel (%p808) target = $region124
        $region123: #{tpu_custom_call.1} parent=75 // pred_region
          %811 = dma.done [#allocation22], 16
        $region124: #{tpu_custom_call.1} parent=75 // pred_fallthru
          _
        // Predicated region
        $region125: #{tpu_custom_call.1} parent=75 // pred_check
          %p812 = pneg %p396
        $region126: #{tpu_custom_call.1} parent=75 // pred_check_branch
          %814 = sbr.rel (%p812) target = $region128
        $region127: #{tpu_custom_call.1} parent=75 // pred_region
          %815 = dma.done [#allocation22], 16
        $region128: #{tpu_custom_call.1} parent=75 // pred_fallthru
          _
        // Predicated region
        $region129: #{tpu_custom_call.1} parent=75 // pred_check
          %p816 = pneg %p417
        $region130: #{tpu_custom_call.1} parent=75 // pred_check_branch
          %818 = sbr.rel (%p816) target = $region132
        $region131: #{tpu_custom_call.1} parent=75 // pred_region
          %819 = dma.done [#allocation25], 16
        $region132: #{tpu_custom_call.1} parent=75 // pred_fallthru
          _
        %s820 = sand.u32 %s77, 1
        %s821 = scalar_lea.sflag [#allocation4], %s820
        %s822 = sand.u32 %s77, 1
        %s823 = smul.addr %s822, 8
        %s824 = scalar_lea.vmem [#allocation3], %s823
        %p825 = pneg %p90
        %p826 = pneg %p87
        %s827 = sand.u32 %s48, 1
        %s828 = scalar_lea.sflag [#allocation7], %s827
        %s829 = sand.u32 %s103, 1
        %s830 = smul.addr %s829, 8
        %s831 = scalar_lea.vmem [#allocation6], %s830
        %p832 = pneg %p116
        %p833 = pneg %p113
        %s834 = sand.u32 %s48, 1
        %s835 = scalar_lea.sflag [#allocation7], %s834
        %s836 = sand.u32 %s129, 1
        %s837 = smul.addr %s836, 8
        %s838 = scalar_lea.vmem [#allocation8], %s837
        %p839 = pneg %p142
        %p840 = pneg %p139
        %s841 = sand.u32 %s48, 1
        %s842 = scalar_lea.sflag [#allocation10], %s841
        %s843 = sand.u32 %s159, 1
        %s844 = smul.addr %s843, 8
        %s845 = scalar_lea.vmem [#allocation9], %s844
        %p846 = pneg %p172
        %p847 = pneg %p169
        %s848 = sand.u32 %s48, 1
        %s849 = scalar_lea.sflag [#allocation10], %s848
        %s850 = sand.u32 %s185, 1
        %s851 = smul.addr %s850, 16
        %s852 = scalar_lea.vmem [#allocation11], %s851
        %p853 = pneg %p198
        %p854 = pneg %p195
        %s855 = sand.u32 %s48, 1
        %s856 = scalar_lea.sflag [#allocation13], %s855
        %s857 = sand.u32 %s211, 1
        %s858 = scalar_lea.vmem [#allocation12], %s857
        %p859 = pneg %p224
        %p860 = pneg %p221
        %s861 = sand.u32 %s48, 1
        %s862 = scalar_lea.sflag [#allocation13], %s861
        %s863 = sand.u32 %s237, 1
        %s864 = smul.addr %s863, 16
        %s865 = scalar_lea.vmem [#allocation14], %s864
        %p866 = pneg %p250
        %p867 = pneg %p247
        %s868 = sand.u32 %s48, 1
        %s869 = scalar_lea.sflag [#allocation16], %s868
        %s870 = sand.u32 %s263, 1
        %s871 = scalar_lea.vmem [#allocation15], %s870
        %p872 = pneg %p276
        %p873 = pneg %p273
        %s874 = sand.u32 %s48, 1
        %s875 = scalar_lea.sflag [#allocation16], %s874
        %s876 = sand.u32 %s289, 1
        %s877 = smul.addr %s876, 16
        %s878 = scalar_lea.vmem [#allocation17], %s877
        %p879 = pneg %p302
        %p880 = pneg %p299
        %s881 = sand.u32 %s48, 1
        %s882 = scalar_lea.sflag [#allocation19], %s881
        %s883 = sand.u32 %s315, 1
        %s884 = scalar_lea.vmem [#allocation18], %s883
        %p885 = pneg %p328
        %p886 = pneg %p325
        %s887 = sand.u32 %s48, 1
        %s888 = scalar_lea.sflag [#allocation19], %s887
        %s889 = sand.u32 %s341, 1
        %s890 = smul.addr %s889, 4
        %s891 = scalar_lea.vmem [#allocation20], %s890
        %p892 = pneg %p354
        %p893 = pneg %p351
        %p894 = pneg %p375
        %p895 = pneg %p372
        %p896 = pneg %p396
        %p897 = pneg %p393
        %p898 = pneg %p417
        %p899 = pneg %p414
        %p900 = pneg %p445
        %p901 = pneg %p442
        %s902 = sand.u32 %s432, 1
        %s903 = scalar_lea.sflag [#allocation5], %s902
        %s904 = sand.u32 %s432, 1
        %s905 = smul.addr %s904, 8
        %s906 = scalar_lea.vmem [#allocation26], %s905
        %p908 = scmp.eq.s32.totalorder %s55, 0
        // Predicated region
        $region133: #{tpu_custom_call.1} parent=75 // pred_check
          %p909 = pneg %p908
        $region134: #{tpu_custom_call.1} parent=75 // pred_check_branch
          %911 = sbr.rel (%p909) target = $region136
        $region135: #{tpu_custom_call.1} parent=75 // pred_region
          %vm912 = vcmask 261120
          %913 = vst.msk [vmem:[#allocation2] sm:$0xff] %vm912, 0.0
        $region136: #{tpu_custom_call.1} parent=75 // pred_fallthru
          _
        %v914 = vld [vmem:[%s716] sm:$0xff]
        %v915 = vpack.c.bf16 %v914, %v914
        %v916 = vld [vmem:[%s752] sm:$0xf]
        %v917 = vld [vmem:[%s752 + $0x4] sm:$0xf]
        %v918 = vld [vmem:[%s752 + $0x8] sm:$0xf]
        %v919 = vld [vmem:[%s752 + $0xc] sm:$0xf]
        %v920 = vld [vmem:[%s760] sm:$0x1]
        %v922 = vlaneseq
        %v923 = vshrl.u32 %v922, 7
        %v924 = vsub.s32 0, %v923
        %v925 = vrot.slane %v920, %v924
        %v931 = vunpack.c.l.b16 %v916
        %v932 = vunpack.c.l.b16 %v917
        %v933 = vunpack.c.l.b16 %v918
        %v934 = vunpack.c.l.b16 %v919
        %v935 = vpack.c.b16 %v932, %v931
        %v936 = vpack.c.b16 %v934, %v933
        %vm939 = vcmask 261120
        %v941 = vsel %vm939, %v915, 0
        %943 = vmatprep.subr.bf16.mxu0 0
        %944 = vmatpush1.bf16.msra.mxu0 %v935
        %945 = vmatprep.subr.bf16.mxu0 0
        %946 = vmatpush1.bf16.msra.mxu0 %v936
        %947 = vmatprep.subr.bf16.mxu0 0
        %948 = vmatpush1.bf16.msra.mxu0 0
        %949 = vmatprep.subr.bf16.mxu0 0
        %950 = vmatpush1.bf16.msra.mxu0 0
        %951 = vmatprep.subr.bf16.mxu0 0
        %952 = vmatpush1.bf16.msra.mxu0 0
        %953 = vmatprep.subr.bf16.mxu0 0
        %954 = vmatpush1.bf16.msra.mxu0 0
        %955 = vmatprep.subr.bf16.mxu0 0
        %956 = vmatpush1.bf16.msra.mxu0 0
        %957 = vmatprep.subr.bf16.mxu0 0
        %958 = vmatpush1.bf16.msra.mxu0 0
        %959 = vmatprep.subr.bf16.mxu0 0
        %960 = vmatpush1.bf16.msra.mxu0 0
        %961 = vmatprep.subr.bf16.mxu0 0
        %962 = vmatpush1.bf16.msra.mxu0 0
        %963 = vmatprep.subr.bf16.mxu0 0
        %964 = vmatpush1.bf16.msra.mxu0 0
        %965 = vmatprep.subr.bf16.mxu0 0
        %966 = vmatpush1.bf16.msra.mxu0 0
        %967 = vmatprep.subr.bf16.mxu0 0
        %968 = vmatpush1.bf16.msra.mxu0 0
        %969 = vmatprep.subr.bf16.mxu0 0
        %970 = vmatpush1.bf16.msra.mxu0 0
        %971 = vmatprep.subr.bf16.mxu0 0
        %972 = vmatpush1.bf16.msra.mxu0 0
        %973 = vmatprep.subr.bf16.mxu0 0
        %974 = vmatpush1.bf16.msra.mxu0 0
        %975 = vmatprep.mubr.bf16.mxu0 0
        %976 = vmatmul.mubr.bf16.gmra.mrb[0].mxu0 %v941
        %v977 = vpop.f32.mrb[0].mxu0
        %v978 = vadd.f32 %v925, %v977
        %v979 = vpop.f32.mrb[0].mxu0
        %v980 = vpop.f32.mrb[0].mxu0
        %v981 = vpop.f32.mrb[0].mxu0
        %982 = vdwg.mxu0
        %v983 = vld [vmem:[%s725] sm:$0xff]
        %v984 = vpack.c.bf16 %v983, %v983
        %v985 = vld [vmem:[%s769] sm:$0xf]
        %v986 = vld [vmem:[%s769 + $0x4] sm:$0xf]
        %v987 = vld [vmem:[%s769 + $0x8] sm:$0xf]
        %v988 = vld [vmem:[%s769 + $0xc] sm:$0xf]
        %v989 = vld [vmem:[%s777] sm:$0x1]
        %v991 = vlaneseq
        %v992 = vshrl.u32 %v991, 7
        %v993 = vsub.s32 0, %v992
        %v994 = vrot.slane %v989, %v993
        %v1000 = vunpack.c.l.b16 %v985
        %v1001 = vunpack.c.l.b16 %v986
        %v1002 = vunpack.c.l.b16 %v987
        %v1003 = vunpack.c.l.b16 %v988
        %v1004 = vpack.c.b16 %v1001, %v1000
        %v1005 = vpack.c.b16 %v1003, %v1002
        %v1009 = vsel %vm939, %v984, 0
        %1011 = vmatprep.subr.bf16.mxu0 0
        %1012 = vmatpush1.bf16.msra.mxu0 %v1004
        %1013 = vmatprep.subr.bf16.mxu0 0
        %1014 = vmatpush1.bf16.msra.mxu0 %v1005
        %1015 = vmatprep.subr.bf16.mxu0 0
        %1016 = vmatpush1.bf16.msra.mxu0 0
        %1017 = vmatprep.subr.bf16.mxu0 0
        %1018 = vmatpush1.bf16.msra.mxu0 0
        %1019 = vmatprep.subr.bf16.mxu0 0
        %1020 = vmatpush1.bf16.msra.mxu0 0
        %1021 = vmatprep.subr.bf16.mxu0 0
        %1022 = vmatpush1.bf16.msra.mxu0 0
        %1023 = vmatprep.subr.bf16.mxu0 0
        %1024 = vmatpush1.bf16.msra.mxu0 0
        %1025 = vmatprep.subr.bf16.mxu0 0
        %1026 = vmatpush1.bf16.msra.mxu0 0
        %1027 = vmatprep.subr.bf16.mxu0 0
        %1028 = vmatpush1.bf16.msra.mxu0 0
        %1029 = vmatprep.subr.bf16.mxu0 0
        %1030 = vmatpush1.bf16.msra.mxu0 0
        %1031 = vmatprep.subr.bf16.mxu0 0
        %1032 = vmatpush1.bf16.msra.mxu0 0
        %1033 = vmatprep.subr.bf16.mxu0 0
        %1034 = vmatpush1.bf16.msra.mxu0 0
        %1035 = vmatprep.subr.bf16.mxu0 0
        %1036 = vmatpush1.bf16.msra.mxu0 0
        %1037 = vmatprep.subr.bf16.mxu0 0
        %1038 = vmatpush1.bf16.msra.mxu0 0
        %1039 = vmatprep.subr.bf16.mxu0 0
        %1040 = vmatpush1.bf16.msra.mxu0 0
        %1041 = vmatprep.subr.bf16.mxu0 0
        %1042 = vmatpush1.bf16.msra.mxu0 0
        %1043 = vmatprep.mubr.bf16.mxu0 0
        %1044 = vmatmul.mubr.bf16.gmra.mrb[0].mxu0 %v1009
        %v1045 = vpop.f32.mrb[0].mxu0
        %v1046 = vadd.f32 %v994, %v1045
        %v1047 = vpop.f32.mrb[0].mxu0
        %v1048 = vpop.f32.mrb[0].mxu0
        %v1049 = vpop.f32.mrb[0].mxu0
        %1050 = vdwg.mxu0
        %v1051 = vld [vmem:[%s734] sm:$0xff]
        %v1052 = vpack.c.bf16 %v1051, %v1051
        %v1053 = vld [vmem:[%s786] sm:$0xf]
        %v1054 = vld [vmem:[%s786 + $0x4] sm:$0xf]
        %v1055 = vld [vmem:[%s786 + $0x8] sm:$0xf]
        %v1056 = vld [vmem:[%s786 + $0xc] sm:$0xf]
        %v1057 = vld [vmem:[%s794] sm:$0x1]
        %v1059 = vlaneseq
        %v1060 = vshrl.u32 %v1059, 7
        %v1061 = vsub.s32 0, %v1060
        %v1062 = vrot.slane %v1057, %v1061
        %v1068 = vunpack.c.l.b16 %v1053
        %v1069 = vunpack.c.l.b16 %v1054
        %v1070 = vunpack.c.l.b16 %v1055
        %v1071 = vunpack.c.l.b16 %v1056
        %v1072 = vpack.c.b16 %v1069, %v1068
        %v1073 = vpack.c.b16 %v1071, %v1070
        %v1077 = vsel %vm939, %v1052, 0
        %1079 = vmatprep.subr.bf16.mxu0 0
        %1080 = vmatpush1.bf16.msra.mxu0 %v1072
        %1081 = vmatprep.subr.bf16.mxu0 0
        %1082 = vmatpush1.bf16.msra.mxu0 %v1073
        %1083 = vmatprep.subr.bf16.mxu0 0
        %1084 = vmatpush1.bf16.msra.mxu0 0
        %1085 = vmatprep.subr.bf16.mxu0 0
        %1086 = vmatpush1.bf16.msra.mxu0 0
        %1087 = vmatprep.subr.bf16.mxu0 0
        %1088 = vmatpush1.bf16.msra.mxu0 0
        %1089 = vmatprep.subr.bf16.mxu0 0
        %1090 = vmatpush1.bf16.msra.mxu0 0
        %1091 = vmatprep.subr.bf16.mxu0 0
        %1092 = vmatpush1.bf16.msra.mxu0 0
        %1093 = vmatprep.subr.bf16.mxu0 0
        %1094 = vmatpush1.bf16.msra.mxu0 0
        %1095 = vmatprep.subr.bf16.mxu0 0
        %1096 = vmatpush1.bf16.msra.mxu0 0
        %1097 = vmatprep.subr.bf16.mxu0 0
        %1098 = vmatpush1.bf16.msra.mxu0 0
        %1099 = vmatprep.subr.bf16.mxu0 0
        %1100 = vmatpush1.bf16.msra.mxu0 0
        %1101 = vmatprep.subr.bf16.mxu0 0
        %1102 = vmatpush1.bf16.msra.mxu0 0
        %1103 = vmatprep.subr.bf16.mxu0 0
        %1104 = vmatpush1.bf16.msra.mxu0 0
        %1105 = vmatprep.subr.bf16.mxu0 0
        %1106 = vmatpush1.bf16.msra.mxu0 0
        %1107 = vmatprep.subr.bf16.mxu0 0
        %1108 = vmatpush1.bf16.msra.mxu0 0
        %1109 = vmatprep.subr.bf16.mxu0 0
        %1110 = vmatpush1.bf16.msra.mxu0 0
        %1111 = vmatprep.mubr.bf16.mxu0 0
        %1112 = vmatmul.mubr.bf16.gmra.mrb[0].mxu0 %v1077
        %v1113 = vpop.f32.mrb[0].mxu0
        %v1114 = vadd.f32 %v1062, %v1113
        %v1115 = vpop.f32.mrb[0].mxu0
        %v1116 = vpop.f32.mrb[0].mxu0
        %v1117 = vpop.f32.mrb[0].mxu0
        %1118 = vdwg.mxu0
        %v1119 = vpack.c.bf16 %v978, %v978
        %v1120 = vpack.c.bf16 %v1046, %v1046
        %vm1121 = vcmask 64512
        %v1123 = vsel %vm1121, %v1119, 0
        %v1126 = vsel %vm1121, %v1120, 0
        %1128 = vmatprep.subr.bf16.mxu0 0
        %1129 = vmatpush1.bf16.xpose.msra.mxu0 %v1126
        %1130 = vmatprep.subr.bf16.mxu0 0
        %1131 = vmatpush1.bf16.xpose.msra.mxu0 0
        %1132 = vmatprep.subr.bf16.mxu0 0
        %1133 = vmatpush1.bf16.xpose.msra.mxu0 0
        %1134 = vmatprep.subr.bf16.mxu0 0
        %1135 = vmatpush1.bf16.xpose.msra.mxu0 0
        %1136 = vmatprep.subr.bf16.mxu0 0
        %1137 = vmatpush1.bf16.xpose.msra.mxu0 0
        %1138 = vmatprep.subr.bf16.mxu0 0
        %1139 = vmatpush1.bf16.xpose.msra.mxu0 0
        %1140 = vmatprep.subr.bf16.mxu0 0
        %1141 = vmatpush1.bf16.xpose.msra.mxu0 0
        %1142 = vmatprep.subr.bf16.mxu0 0
        %1143 = vmatpush1.bf16.xpose.msra.mxu0 0
        %1144 = vmatprep.subr.bf16.mxu0 0
        %1145 = vmatpush1.bf16.xpose.msra.mxu0 0
        %1146 = vmatprep.subr.bf16.mxu0 0
        %1147 = vmatpush1.bf16.xpose.msra.mxu0 0
        %1148 = vmatprep.subr.bf16.mxu0 0
        %1149 = vmatpush1.bf16.xpose.msra.mxu0 0
        %1150 = vmatprep.subr.bf16.mxu0 0
        %1151 = vmatpush1.bf16.xpose.msra.mxu0 0
        %1152 = vmatprep.subr.bf16.mxu0 0
        %1153 = vmatpush1.bf16.xpose.msra.mxu0 0
        %1154 = vmatprep.subr.bf16.mxu0 0
        %1155 = vmatpush1.bf16.xpose.msra.mxu0 0
        %1156 = vmatprep.subr.bf16.mxu0 0
        %1157 = vmatpush1.bf16.xpose.msra.mxu0 0
        %1158 = vmatprep.subr.bf16.mxu0 0
        %1159 = vmatpush1.bf16.xpose.msra.mxu0 0
        %1160 = vmatprep.mubr.bf16.mxu0 0
        %1161 = vmatmul.mubr.bf16.gmra.mrb[0].mxu0 %v1123
        %v1162 = vpop.f32.mrb[0].mxu0
        %v1163 = vadd.f32 0.0, %v1162
        %v1164 = vpop.f32.mrb[0].mxu0
        %v1165 = vpop.f32.mrb[0].mxu0
        %v1166 = vpop.f32.mrb[0].mxu0
        %1167 = vdwg.mxu0
        %v1168 = vld [vmem:[%s743] sm:$0xff]
        %v1169 = vmax.f32 %v1168, 1e-06
        %v1170 = vlog2.pop %v1169
        %v1171 = vmul.f32 %v1170, 0.6931472
        %v1172 = vadd.f32 %v1171, %v1163
        %v1173 = vsel %vm1121, %v1172, -inf
        %1174 = vmax.xlane.f32.xlu0 %v1173
        %v1175 = vpop.xlane.xlu0 %1174
        %v1176 = vsub.f32 %v1172, %v1175
        %v1177 = vmul.f32 %v1176, 1.442695
        %v1178 = vpow.pop %v1177
        %v1179 = vsel %vm1121, %v1178, 0.0
        %1180 = vadd.xlane.f32.xlu0 %v1179
        %v1181 = vpop.xlane.xlu0 %1180
        %v1182 = vrcp.pop %v1181
        %v1183 = vmul.f32 %v1178, %v1182
        %v1184 = vpack.c.bf16 %v1183, %v1183
        %v1185 = vpack.c.bf16 %v1114, %v1114
        %v1187 = vsel %vm1121, %v1184, 0
        %vm1189 = vcmask 1043456
        %v1191 = vsel %vm1189, %v1185, 0
        %1193 = vmatprep.subr.bf16.mxu0 0
        %1194 = vmatpush1.bf16.msra.mxu0 %v1191
        %1195 = vmatprep.subr.bf16.mxu0 0
        %1196 = vmatpush1.bf16.msra.mxu0 0
        %1197 = vmatprep.subr.bf16.mxu0 0
        %1198 = vmatpush1.bf16.msra.mxu0 0
        %1199 = vmatprep.subr.bf16.mxu0 0
        %1200 = vmatpush1.bf16.msra.mxu0 0
        %1201 = vmatprep.subr.bf16.mxu0 0
        %1202 = vmatpush1.bf16.msra.mxu0 0
        %1203 = vmatprep.subr.bf16.mxu0 0
        %1204 = vmatpush1.bf16.msra.mxu0 0
        %1205 = vmatprep.subr.bf16.mxu0 0
        %1206 = vmatpush1.bf16.msra.mxu0 0
        %1207 = vmatprep.subr.bf16.mxu0 0
        %1208 = vmatpush1.bf16.msra.mxu0 0
        %1209 = vmatprep.subr.bf16.mxu0 0
        %1210 = vmatpush1.bf16.msra.mxu0 0
        %1211 = vmatprep.subr.bf16.mxu0 0
        %1212 = vmatpush1.bf16.msra.mxu0 0
        %1213 = vmatprep.subr.bf16.mxu0 0
        %1214 = vmatpush1.bf16.msra.mxu0 0
        %1215 = vmatprep.subr.bf16.mxu0 0
        %1216 = vmatpush1.bf16.msra.mxu0 0
        %1217 = vmatprep.subr.bf16.mxu0 0
        %1218 = vmatpush1.bf16.msra.mxu0 0
        %1219 = vmatprep.subr.bf16.mxu0 0
        %1220 = vmatpush1.bf16.msra.mxu0 0
        %1221 = vmatprep.subr.bf16.mxu0 0
        %1222 = vmatpush1.bf16.msra.mxu0 0
        %1223 = vmatprep.subr.bf16.mxu0 0
        %1224 = vmatpush1.bf16.msra.mxu0 0
        %1225 = vmatprep.mubr.bf16.mxu0 0
        %1226 = vmatmul.mubr.bf16.gmra.mrb[0].mxu0 %v1187
        %v1227 = vpop.f32.mrb[0].mxu0
        %v1228 = vadd.f32 0.0, %v1227
        %v1229 = vpop.f32.mrb[0].mxu0
        %v1230 = vpop.f32.mrb[0].mxu0
        %v1231 = vpop.f32.mrb[0].mxu0
        %1232 = vdwg.mxu0
        %v1233 = vld [vmem:[#allocation2] sm:$0xff]
        %v1234 = vpack.c.bf16 %v1228, %v1228
        %v1235 = vld [vmem:[%s803] sm:$0xf]
        %v1237 = vsel %vm1121, %v1234, 0
        %v1240 = vsel %vm1189, %v1235, 0
        %1242 = vmatprep.subr.bf16.mxu0 0
        %1243 = vmatpush1.bf16.msra.mxu0 %v1240
        %1244 = vmatprep.subr.bf16.mxu0 0
        %1245 = vmatpush1.bf16.msra.mxu0 0
        %1246 = vmatprep.subr.bf16.mxu0 0
        %1247 = vmatpush1.bf16.msra.mxu0 0
        %1248 = vmatprep.subr.bf16.mxu0 0
        %1249 = vmatpush1.bf16.msra.mxu0 0
        %1250 = vmatprep.subr.bf16.mxu0 0
        %1251 = vmatpush1.bf16.msra.mxu0 0
        %1252 = vmatprep.subr.bf16.mxu0 0
        %1253 = vmatpush1.bf16.msra.mxu0 0
        %1254 = vmatprep.subr.bf16.mxu0 0
        %1255 = vmatpush1.bf16.msra.mxu0 0
        %1256 = vmatprep.subr.bf16.mxu0 0
        %1257 = vmatpush1.bf16.msra.mxu0 0
        %1258 = vmatprep.subr.bf16.mxu0 0
        %1259 = vmatpush1.bf16.msra.mxu0 0
        %1260 = vmatprep.subr.bf16.mxu0 0
        %1261 = vmatpush1.bf16.msra.mxu0 0
        %1262 = vmatprep.subr.bf16.mxu0 0
        %1263 = vmatpush1.bf16.msra.mxu0 0
        %1264 = vmatprep.subr.bf16.mxu0 0
        %1265 = vmatpush1.bf16.msra.mxu0 0
        %1266 = vmatprep.subr.bf16.mxu0 0
        %1267 = vmatpush1.bf16.msra.mxu0 0
        %1268 = vmatprep.subr.bf16.mxu0 0
        %1269 = vmatpush1.bf16.msra.mxu0 0
        %1270 = vmatprep.subr.bf16.mxu0 0
        %1271 = vmatpush1.bf16.msra.mxu0 0
        %1272 = vmatprep.subr.bf16.mxu0 0
        %1273 = vmatpush1.bf16.msra.mxu0 0
        %1274 = vmatprep.mubr.bf16.mxu0 0
        %1275 = vmatmul.mubr.bf16.gmra.mrb[0].mxu0 %v1237
        %v1276 = vpop.f32.mrb[0].mxu0
        %v1277 = vadd.f32 0.0, %v1276
        %v1278 = vpop.f32.mrb[0].mxu0
        %v1279 = vpop.f32.mrb[0].mxu0
        %v1280 = vpop.f32.mrb[0].mxu0
        %1281 = vdwg.mxu0
        %v1282 = vadd.f32 %v1233, %v1277
        %1283 = vst.msk [vmem:[#allocation2] sm:$0xff] %vm939, %v1282
        %p1284 = scmp.eq.s32.totalorder %s55, 3
        // Predicated region
        $region137: #{tpu_custom_call.1} parent=75 // pred_check
          %p1285 = pneg %p1284
        $region138: #{tpu_custom_call.1} parent=75 // pred_check_branch
          %1287 = sbr.rel (%p1285) target = $region140
        $region139: #{tpu_custom_call.1} parent=75 // pred_region
          %v1288 = vld [vmem:[#allocation2] sm:$0xff]
          %v1289 = vadd.f32 %v914, %v1288
          %v1290 = vld [vmem:[#allocation21] sm:$0x1]
          %v1292 = vlaneseq
          %v1293 = vshrl.u32 %v1292, 7
          %v1294 = vsub.s32 0, %v1293
          %v1295 = vrot.slane %v1290, %v1294
          %v1297 = vadd.f32 %v1289, %v1295
          %v1298 = vsel %vm939, %v1297, 0.0
          %1299 = vadd.xlane.f32.xlu0 %v1298
          %v1300 = vpop.xlane.xlu0 %1299
          %v1301 = vrcp.pop 32.0
          %v1302 = vmul.f32 %v1300, %v1301
          %v1303 = vsub.f32 %v1297, %v1302
          %v1304 = vmul.f32 %v1303, %v1303
          %v1305 = vsel %vm939, %v1304, 0.0
          %1306 = vadd.xlane.f32.xlu0 %v1305
          %v1307 = vpop.xlane.xlu0 %1306
          %v1308 = vmul.f32 %v1307, %v1301
          %v1309 = vadd.f32 %v1308, 1e-05
          %v1310 = vrsqrt.pop %v1309
          %v1311 = vmul.f32 %v1303, %v1310
          %v1312 = vld [vmem:[#allocation23] sm:$0x1]
          %v1314 = vlaneseq
          %v1315 = vshrl.u32 %v1314, 7
          %v1316 = vsub.s32 0, %v1315
          %v1317 = vrot.slane %v1312, %v1316
          %v1319 = vmul.f32 %v1311, %v1317
          %v1320 = vld [vmem:[#allocation24] sm:$0x1]
          %v1322 = vlaneseq
          %v1323 = vshrl.u32 %v1322, 7
          %v1324 = vsub.s32 0, %v1323
          %v1325 = vrot.slane %v1320, %v1324
          %v1327 = vadd.f32 %v1319, %v1325
          %1328 = vst.msk [vmem:[%s906] sm:$0xff] %vm939, %v1327
        $region140: #{tpu_custom_call.1} parent=75 // pred_fallthru
          _
        %s1329 = sand.u32 %s432, 1
        %s1330 = scalar_lea.sflag [#allocation5], %s1329
        %s1331 = sand.u32 %s432, 1
        %s1332 = smul.addr %s1331, 8
        %s1333 = scalar_lea.vmem [#allocation26], %s1332
        // Predicated region
        $region141: #{tpu_custom_call.1} parent=75 // pred_check
          %p1334 = pneg %p442
        $region142: #{tpu_custom_call.1} parent=75 // pred_check_branch
          %1336 = sbr.rel (%p1334) target = $region144
        $region143: #{tpu_custom_call.1} parent=75 // pred_region
          %s1338 = ssub.s32 128, 128
          %1339 = vsyncadd %s1330, %s1338
          %s1340 = sadd.s32 %s54, %s53
          %s1341 = smul.addr %s1340, 128
          %s1342 = scalar_lea.hbm %s14, %s1341
          %s1344 = sshll.u32 %s1333, 4
          %s1345 = int_to_ptr.vmem [resolvable:$true] %s1344
          %1347 = dma.vmem_to_hbm [thread:$0]  %s1345, 128, %s1342, %s1330
        $region144: #{tpu_custom_call.1} parent=75 // pred_fallthru
          _
      $region76: #{tpu_custom_call.1} parent=5 // pred_fallthru
        _
      %p1348 = scmp.le.s32.totalorder 2, %s43
      // Predicated region
      $region145: #{tpu_custom_call.1} parent=5 // pred_check
        %p1349 = pneg %p1348
      $region146: #{tpu_custom_call.1} parent=5 // pred_check_branch
        %1351 = sbr.rel (%p1349) target = $region148
      $region147: #{tpu_custom_call.1} parent=5 // pred_region
        %s1352 = ssub.s32 %s43, 2
        // Predicated region
        $region149: #{tpu_custom_call.1} parent=147 // pred_check
          %p1353 = pneg %p448
        $region150: #{tpu_custom_call.1} parent=147 // pred_check_branch
          %1355 = sbr.rel (%p1353) target = $region152
        $region151: #{tpu_custom_call.1} parent=147 // pred_region
          %s1356 = sand.u32 %s433, 1
          %s1357 = scalar_lea.sflag [#allocation5], %s1356
          %s1358 = sand.u32 %s433, 1
          %s1359 = smul.addr %s1358, 8
          %s1360 = scalar_lea.vmem [#allocation26], %s1359
          %1361 = dma.done %s1357, 128
        $region152: #{tpu_custom_call.1} parent=147 // pred_fallthru
          _
      $region148: #{tpu_custom_call.1} parent=5 // pred_fallthru
        _
    $region6: #{tpu_custom_call.1} parent=1 // loop_footer
      %s47 = sadd.s32 1, %s43
    $region7: #{tpu_custom_call.1} parent=1 // loop_footer_branch
      %42 = sbr.rel target = $region3
    $region8: #{tpu_custom_call.1} parent=1 // loop_exit
      _
    %1362 = vsyncpa [#allocation4], 1
    %s1363 = scalar_lea.sflag [#allocation4], 1
    %1364 = vsyncpa %s1363, 1
    %1365 = vsyncpa [#allocation7], 1
    %s1366 = scalar_lea.sflag [#allocation7], 1
    %1367 = vsyncpa %s1366, 1
    %1368 = vsyncpa [#allocation10], 1
    %s1369 = scalar_lea.sflag [#allocation10], 1
    %1370 = vsyncpa %s1369, 1
    %1371 = vsyncpa [#allocation13], 1
    %s1372 = scalar_lea.sflag [#allocation13], 1
    %1373 = vsyncpa %s1372, 1
    %1374 = vsyncpa [#allocation16], 1
    %s1375 = scalar_lea.sflag [#allocation16], 1
    %1376 = vsyncpa %s1375, 1
    %1377 = vsyncpa [#allocation19], 1
    %s1378 = scalar_lea.sflag [#allocation19], 1
    %1379 = vsyncpa %s1378, 1
    %1380 = vsyncpa [#allocation22], 1
    %1381 = vsyncpa [#allocation25], 1
    %1382 = vsyncpa [#allocation5], 1
    %s1383 = scalar_lea.sflag [#allocation5], 1
    %1384 = vsyncpa %s1383, 1

</llo_original>
